<compile_context>
chip_gen: v5e
topology: v5e:2x2
jax: 0.10.0
libtpu: 0.0.40
codegen_flags: <defaults>
</compile_context>

<pallas_src>
import functools

import jax
import jax.numpy as jnp
from jax.experimental import pallas as pl
from jax.experimental.pallas import tpu as pltpu


def _fc_kernel(h_ref, w_ref, a_ref, z_ref, s_ref):
    # h_ref: (tm, in_dim) node-feature tile; w_ref: (in_dim, out_dim) grid-invariant
    # a_ref: (2, out_dim) = [a_src ; a_dst] grid-invariant
    z = jnp.dot(h_ref[...], w_ref[...], preferred_element_type=jnp.float32)  # (tm, D) f32
    z_ref[...] = z.astype(z_ref.dtype)
    # scores[(0,1), j] = (a_src . z_j, a_dst . z_j)  -> (2, tm), lane-dense store
    s_ref[...] = jax.lax.dot_general(
        a_ref[...].astype(jnp.float32), z,
        (((1,), (1,)), ((), ())), preferred_element_type=jnp.float32,
    )


def _attn_kernel(sd_ref, ssrc_ref, z_ref, adj_ref, o_ref):
    s_dst = sd_ref[...]                               # (td, 1)  f32, dst-node scores
    s_src = ssrc_ref[...]                             # (1,  N)  f32, src-node scores
    z = z_ref[...]                                    # (N,  D)  all source projections
    adj = adj_ref[...].astype(jnp.float32)            # (td, N)  0/1 in-edge mask

    # e[i, j] = leaky_relu(a_src . z_j + a_dst . z_dst_i)
    e = s_dst + s_src                                 # (td, N) broadcast add (VPU)
    e = jnp.where(e >= 0, e, jnp.float32(0.01) * e)   # LeakyReLU(0.01)

    # masked softmax over in-neighbours (== softmax over the DGL mailbox)
    e = jnp.where(adj > 0, e, jnp.float32(-1e30))
    m = jnp.max(e, axis=-1, keepdims=True)            # (td, 1)  XLU
    p = jnp.exp(e - m) * adj                          # EUP + VPU, masked lanes -> 0
    denom = jnp.sum(p, axis=-1, keepdims=True)        # (td, 1)  XLU

    # aggregate unnormalized, then scale the (td, D) result (cheaper than scaling (td, N))
    acc = jnp.dot(p.astype(z.dtype), z, preferred_element_type=jnp.float32)
    o_ref[...] = (acc * pl.reciprocal(denom, approx=True)).astype(o_ref.dtype)


@functools.partial(jax.jit, static_argnames=("tm", "td", "compute_dtype"))
def sgat_forward(h, w_fc, w_attn, adj, pnode_id, *, tm=256, td=128,
                 compute_dtype=jnp.float32):
    """SGATLayer forward.

    h:        (N, in_dim)        node features (the nodes that get 'z', i.e. ppnode_id nodes)
    w_fc:     (out_dim, in_dim)  nn.Linear weight (PyTorch layout, no bias)
    w_attn:   (1, 2*out_dim)     attn_fc weight (PyTorch layout, no bias)
    adj:      (N_dst, N)         0/1 mask of sedge_id in-edges for each pull destination
    pnode_id: (N_dst,)           destination ("pull") node indices into h's node set
    returns:  (N_dst, out_dim)   aggregated features, float32
    """
    N, in_dim = h.shape
    out_dim = w_fc.shape[0]
    n_dst = pnode_id.shape[0]

    tm = min(tm, N)
    td = min(td, n_dst)
    assert N % tm == 0 and n_dst % td == 0, "node counts must divide the row tiles"

    cbytes = jnp.dtype(compute_dtype).itemsize
    hc = h.astype(compute_dtype)
    w1 = w_fc.T.astype(compute_dtype)                      # (in_dim, out_dim)
    a_cat = w_attn.reshape(2, out_dim).astype(jnp.float32)  # row 0: a_src, row 1: a_dst
    adj_c = adj.astype(compute_dtype)

    # ---- kernel 1: z = h @ W^T  +  per-node attention scores, tiled over node rows ----
    fc_cost = pl.CostEstimate(
        flops=2 * N * in_dim * out_dim + 4 * N * out_dim,
        transcendentals=0,
        bytes_accessed=(N * in_dim + in_dim * out_dim + N * out_dim) * cbytes
        + 2 * out_dim * 4 + 2 * N * 4,
    )
    z, scores = pl.pallas_call(
        _fc_kernel,
        out_shape=(jax.ShapeDtypeStruct((N, out_dim), compute_dtype),
                   jax.ShapeDtypeStruct((2, N), jnp.float32)),
        grid_spec=pltpu.PrefetchScalarGridSpec(
            num_scalar_prefetch=0,
            grid=(N // tm,),
            in_specs=[
                pl.BlockSpec((tm, in_dim), lambda i: (i, 0)),       # h tile
                pl.BlockSpec((in_dim, out_dim), lambda i: (0, 0)),  # W (grid-invariant)
                pl.BlockSpec((2, out_dim), lambda i: (0, 0)),       # [a_src; a_dst]
            ],
            out_specs=[
                pl.BlockSpec((tm, out_dim), lambda i: (i, 0)),      # z tile
                pl.BlockSpec((2, tm), lambda i: (0, i)),            # scores (lane-dense)
            ],
        ),
        compiler_params=pltpu.CompilerParams(dimension_semantics=("parallel",)),
        cost_estimate=fc_cost,
    )(hc, w1, a_cat)

    # Graph indexing stays in XLA: only a scalar-per-destination gather is needed now.
    s_src = scores[0:1, :]                                          # (1, N)
    s_dst = jnp.take(scores[1], pnode_id, axis=0).reshape(n_dst, 1)  # (N_dst, 1)

    # ---- kernel 2: masked softmax + aggregation, tiled over destinations ----
    attn_cost = pl.CostEstimate(
        flops=2 * n_dst * N * out_dim + 6 * n_dst * N + n_dst * out_dim,
        transcendentals=n_dst * N + n_dst,
        bytes_accessed=(N * out_dim + n_dst * N) * cbytes
        + n_dst * 4 + N * 4 + n_dst * out_dim * 4,
    )
    out = pl.pallas_call(
        _attn_kernel,
        out_shape=jax.ShapeDtypeStruct((n_dst, out_dim), jnp.float32),
        grid_spec=pltpu.PrefetchScalarGridSpec(
            num_scalar_prefetch=0,
            grid=(n_dst // td,),
            in_specs=[
                pl.BlockSpec((td, 1), lambda i: (i, 0)),            # dst scores tile
                pl.BlockSpec((1, N), lambda i: (0, 0)),             # src scores (grid-invariant)
                pl.BlockSpec((N, out_dim), lambda i: (0, 0)),       # full z (grid-invariant)
                pl.BlockSpec((td, N), lambda i: (i, 0)),            # adjacency tile
            ],
            out_specs=pl.BlockSpec((td, out_dim), lambda i: (i, 0)),
        ),
        compiler_params=pltpu.CompilerParams(dimension_semantics=("parallel",)),
        cost_estimate=attn_cost,
    )(s_dst, s_src, z, adj_c)

    return out


def _reference(h, w_fc, w_attn, adj, pnode_id):
    """Pure-JAX reference mirroring the PyTorch/DGL forward (float32)."""
    out_dim = w_fc.shape[0]
    z = h @ w_fc.T                                               # (N, D)
    zd = z[pnode_id]                                             # (N_dst, D)
    a_src = w_attn[:, :out_dim]                                  # (1, D)
    a_dst = w_attn[:, out_dim:]                                  # (1, D)
    s_src = a_src @ z.T                                          # (1, N)
    s_dst = jnp.sum(zd * a_dst, axis=-1, keepdims=True)          # (N_dst, 1)
    e = s_dst + s_src
    e = jnp.where(e >= 0, e, 0.01 * e)                           # LeakyReLU(0.01)
    e = jnp.where(adj > 0, e, -jnp.inf)
    alpha = jax.nn.softmax(e, axis=-1)
    alpha = jnp.where(adj > 0, alpha, 0.0)
    return alpha @ z


if __name__ == "__main__":
    # Small graph, but with 128-multiple dims so every vreg lane / MXU column is used.
    N, N_DST, IN_DIM, OUT_DIM = 512, 256, 128, 128

    key = jax.random.PRNGKey(0)
    kh, kw, ka, kadj, kperm = jax.random.split(key, 5)

    h = jax.random.normal(kh, (N, IN_DIM), dtype=jnp.float32)
    # nn.Linear(in_dim, out_dim, bias=False): weight (out_dim, in_dim)
    w_fc = jax.random.normal(kw, (OUT_DIM, IN_DIM), dtype=jnp.float32) * 0.1
    # nn.Linear(2*out_dim, 1, bias=False): weight (1, 2*out_dim)
    w_attn = jax.random.normal(ka, (1, 2 * OUT_DIM), dtype=jnp.float32) * 0.1

    # Destination ("pull") nodes and a dense adjacency of their sedge_id in-edges.
    pnode_id = jax.random.permutation(kperm, N)[:N_DST]
    adj = (jax.random.uniform(kadj, (N_DST, N)) < 0.05).astype(jnp.float32)
    adj = adj.at[jnp.arange(N_DST), pnode_id].set(1.0)   # guarantee >=1 in-edge per dst

    ref = _reference(h, w_fc, w_attn, adj, pnode_id)

    # Exact-semantics path: float32 matmul operands.
    out = sgat_forward(h, w_fc, w_attn, adj, pnode_id, compute_dtype=jnp.float32)
    out = jax.block_until_ready(out)
    assert out.shape == (N_DST, OUT_DIM)
    # Tolerance allows for backend matmul-precision defaults + approx reciprocal (~2e-4 rel).
    assert jnp.allclose(out, ref, atol=5e-3, rtol=5e-3), "f32 mismatch vs reference"

    # Fast path: bf16 matmul operands / adjacency, f32 accumulation, softmax and output.
    out_bf16 = sgat_forward(h, w_fc, w_attn, adj, pnode_id, compute_dtype=jnp.bfloat16)
    out_bf16 = jax.block_until_ready(out_bf16)
    assert jnp.allclose(out_bf16, ref, atol=6e-2, rtol=6e-2), "bf16 mismatch vs reference"

    print("KERNEL_OK")
</pallas_src>

<mosaic_0001>
module attributes {stable_mosaic.version = 11 : i64} {
  func.func @_fc_kernel(%arg0: i32, %arg1: memref<256x128xf32, #tpu.memory_space<vmem>>, %arg2: memref<128x128xf32, #tpu.memory_space<vmem>>, %arg3: memref<2x128xf32, #tpu.memory_space<vmem>>, %arg4: memref<256x128xf32, #tpu.memory_space<vmem>>, %arg5: memref<2x256xf32, #tpu.memory_space<vmem>>) attributes {dimension_semantics = [#tpu.dimension_semantics<parallel>], iteration_bounds = array<i64: 2>, scalar_prefetch = 0 : i64, scratch_operands = 0 : i64, tpu.core_type = #tpu.core_type<tc>, window_params = [{transform_indices = @transform_0, window_bounds = array<i64: 256, 128>}, {pipeline_mode = #tpu.pipeline_mode<synchronous>, transform_indices = @transform_1, window_bounds = array<i64: 128, 128>}, {pipeline_mode = #tpu.pipeline_mode<synchronous>, transform_indices = @transform_2, window_bounds = array<i64: 2, 128>}, {transform_indices = @transform_3, window_bounds = array<i64: 256, 128>}, {transform_indices = @transform_4, window_bounds = array<i64: 2, 256>}]} {
    %c0 = arith.constant 0 : index
    %c0_0 = arith.constant 0 : index
    %0 = vector.load %arg1[%c0, %c0_0] : memref<256x128xf32, #tpu.memory_space<vmem>>, vector<256x128xf32>
    %c0_1 = arith.constant 0 : index
    %c0_2 = arith.constant 0 : index
    %1 = vector.load %arg2[%c0_1, %c0_2] : memref<128x128xf32, #tpu.memory_space<vmem>>, vector<128x128xf32>
    %cst = arith.constant dense<0.000000e+00> : vector<256x128xf32>
    %2 = tpu.matmul %0, %1, %cst {dimension_numbers = #tpu.dot_dimension_numbers<[1], [0], [0], [1], [0, 0, 1, 1], [], []>} : vector<256x128xf32>, vector<128x128xf32>, vector<256x128xf32> -> vector<256x128xf32>
    %c0_3 = arith.constant 0 : index
    %c0_4 = arith.constant 0 : index
    %3 = vector.load %arg4[%c0_3, %c0_4] : memref<256x128xf32, #tpu.memory_space<vmem>>, vector<256x128xf32>
    tpu.vector_store %arg4[%c0_3, %c0_4], %2 {strides = array<i32>} : memref<256x128xf32, #tpu.memory_space<vmem>>, vector<256x128xf32>,
    %c0_5 = arith.constant 0 : index
    %c0_6 = arith.constant 0 : index
    %4 = vector.load %arg3[%c0_5, %c0_6] : memref<2x128xf32, #tpu.memory_space<vmem>>, vector<2x128xf32>
    %cst_7 = arith.constant dense<0.000000e+00> : vector<2x256xf32>
    %5 = tpu.matmul %4, %2, %cst_7 {dimension_numbers = #tpu.dot_dimension_numbers<[1], [1], [0], [0], [0, 0, 1, 0], [], []>} : vector<2x128xf32>, vector<256x128xf32>, vector<2x256xf32> -> vector<2x256xf32>
    %c0_8 = arith.constant 0 : index
    %c0_9 = arith.constant 0 : index
    %6 = vector.load %arg5[%c0_8, %c0_9] : memref<2x256xf32, #tpu.memory_space<vmem>>, vector<2x256xf32>
    tpu.vector_store %arg5[%c0_8, %c0_9], %5 {strides = array<i32>} : memref<2x256xf32, #tpu.memory_space<vmem>>, vector<2x256xf32>,
    return
  }
  func.func @transform_0(%arg0: i32) -> (i32, i32) {
    %c0_i32 = arith.constant 0 : i32
    %c0_i32_0 = arith.constant 0 : i32
    return %arg0, %c0_i32 : i32, i32
  }
  func.func @transform_1(%arg0: i32) -> (i32, i32) {
    %c0_i32 = arith.constant 0 : i32
    %c0_i32_0 = arith.constant 0 : i32
    %c0_i32_1 = arith.constant 0 : i32
    return %c0_i32, %c0_i32_0 : i32, i32
  }
  func.func @transform_2(%arg0: i32) -> (i32, i32) {
    %c0_i32 = arith.constant 0 : i32
    %c0_i32_0 = arith.constant 0 : i32
    %c0_i32_1 = arith.constant 0 : i32
    return %c0_i32, %c0_i32_0 : i32, i32
  }
  func.func @transform_3(%arg0: i32) -> (i32, i32) {
    %c0_i32 = arith.constant 0 : i32
    %c0_i32_0 = arith.constant 0 : i32
    return %arg0, %c0_i32 : i32, i32
  }
  func.func @transform_4(%arg0: i32) -> (i32, i32) {
    %c0_i32 = arith.constant 0 : i32
    %c0_i32_0 = arith.constant 0 : i32
    return %c0_i32, %arg0 : i32, i32
  }
}

module attributes {stable_mosaic.version = 11 : i64} {
  func.func @_attn_kernel(%arg0: i32, %arg1: memref<128x1xf32, #tpu.memory_space<vmem>>, %arg2: memref<1x512xf32, #tpu.memory_space<vmem>>, %arg3: memref<512x128xf32, #tpu.memory_space<vmem>>, %arg4: memref<128x512xf32, #tpu.memory_space<vmem>>, %arg5: memref<128x128xf32, #tpu.memory_space<vmem>>) attributes {dimension_semantics = [#tpu.dimension_semantics<parallel>], iteration_bounds = array<i64: 2>, scalar_prefetch = 0 : i64, scratch_operands = 0 : i64, tpu.core_type = #tpu.core_type<tc>, window_params = [{transform_indices = @transform_0, window_bounds = array<i64: 128, 1>}, {pipeline_mode = #tpu.pipeline_mode<synchronous>, transform_indices = @transform_1, window_bounds = array<i64: 1, 512>}, {pipeline_mode = #tpu.pipeline_mode<synchronous>, transform_indices = @transform_2, window_bounds = array<i64: 512, 128>}, {transform_indices = @transform_3, window_bounds = array<i64: 128, 512>}, {transform_indices = @transform_4, window_bounds = array<i64: 128, 128>}]} {
    %c0 = arith.constant 0 : index
    %c0_0 = arith.constant 0 : index
    %0 = vector.load %arg1[%c0, %c0_0] : memref<128x1xf32, #tpu.memory_space<vmem>>, vector<128x1xf32>
    %c0_1 = arith.constant 0 : index
    %c0_2 = arith.constant 0 : index
    %1 = vector.load %arg2[%c0_1, %c0_2] : memref<1x512xf32, #tpu.memory_space<vmem>>, vector<1x512xf32>
    %c0_3 = arith.constant 0 : index
    %c0_4 = arith.constant 0 : index
    %2 = vector.load %arg3[%c0_3, %c0_4] : memref<512x128xf32, #tpu.memory_space<vmem>>, vector<512x128xf32>
    %c0_5 = arith.constant 0 : index
    %c0_6 = arith.constant 0 : index
    %3 = vector.load %arg4[%c0_5, %c0_6] : memref<128x512xf32, #tpu.memory_space<vmem>>, vector<128x512xf32>
    %4 = vector.broadcast %0 : vector<128x1xf32> to vector<128x512xf32>
    %5 = vector.broadcast %1 : vector<1x512xf32> to vector<128x512xf32>
    %6 = arith.addf %4, %5 : vector<128x512xf32>
    %cst = arith.constant 0.000000e+00 : f32
    %7 = vector.broadcast %cst : f32 to vector<128x512xf32>
    %8 = arith.cmpf oge, %6, %7 : vector<128x512xf32>
    %cst_7 = arith.constant 0.00999999977 : f32
    %9 = vector.broadcast %cst_7 : f32 to vector<128x512xf32>
    %10 = arith.mulf %9, %6 : vector<128x512xf32>
    %11 = arith.select %8, %6, %10 : vector<128x512xi1>, vector<128x512xf32>
    %cst_8 = arith.constant 0.000000e+00 : f32
    %12 = vector.broadcast %cst_8 : f32 to vector<128x512xf32>
    %13 = arith.cmpf ogt, %3, %12 : vector<128x512xf32>
    %cst_9 = arith.constant -1.000000e+30 : f32
    %14 = vector.broadcast %cst_9 : f32 to vector<128x512xf32>
    %15 = arith.select %13, %11, %14 : vector<128x512xi1>, vector<128x512xf32>
    %cst_10 = arith.constant dense<0xFF800000> : vector<128xf32>
    %16 = vector.multi_reduction <maximumf>, %15, %cst_10 [1] : vector<128x512xf32> to vector<128xf32>
    %17 = vector.shape_cast %16 : vector<128xf32> to vector<128x1xf32>
    %18 = vector.broadcast %17 : vector<128x1xf32> to vector<128x512xf32>
    %19 = arith.subf %15, %18 : vector<128x512xf32>
    %20 = math.exp %19 : vector<128x512xf32>
    %21 = arith.mulf %20, %3 : vector<128x512xf32>
    %cst_11 = arith.constant dense<0.000000e+00> : vector<128xf32>
    %22 = vector.multi_reduction <add>, %21, %cst_11 [1] : vector<128x512xf32> to vector<128xf32>
    %23 = vector.shape_cast %22 : vector<128xf32> to vector<128x1xf32>
    %cst_12 = arith.constant dense<0.000000e+00> : vector<128x128xf32>
    %24 = tpu.matmul %21, %2, %cst_12 {dimension_numbers = #tpu.dot_dimension_numbers<[1], [0], [0], [1], [0, 0, 1, 1], [], []>} : vector<128x512xf32>, vector<512x128xf32>, vector<128x128xf32> -> vector<128x128xf32>
    %25 = tpu.reciprocal %23 {approx = true} : vector<128x1xf32> -> vector<128x1xf32>
    %26 = vector.broadcast %25 : vector<128x1xf32> to vector<128x128xf32>
    %27 = arith.mulf %24, %26 : vector<128x128xf32>
    %c0_13 = arith.constant 0 : index
    %c0_14 = arith.constant 0 : index
    %28 = vector.load %arg5[%c0_13, %c0_14] : memref<128x128xf32, #tpu.memory_space<vmem>>, vector<128x128xf32>
    tpu.vector_store %arg5[%c0_13, %c0_14], %27 {strides = array<i32>} : memref<128x128xf32, #tpu.memory_space<vmem>>, vector<128x128xf32>,
    return
  }
  func.func @transform_0(%arg0: i32) -> (i32, i32) {
    %c0_i32 = arith.constant 0 : i32
    %c0_i32_0 = arith.constant 0 : i32
    return %arg0, %c0_i32 : i32, i32
  }
  func.func @transform_1(%arg0: i32) -> (i32, i32) {
    %c0_i32 = arith.constant 0 : i32
    %c0_i32_0 = arith.constant 0 : i32
    %c0_i32_1 = arith.constant 0 : i32
    return %c0_i32, %c0_i32_0 : i32, i32
  }
  func.func @transform_2(%arg0: i32) -> (i32, i32) {
    %c0_i32 = arith.constant 0 : i32
    %c0_i32_0 = arith.constant 0 : i32
    %c0_i32_1 = arith.constant 0 : i32
    return %c0_i32, %c0_i32_0 : i32, i32
  }
  func.func @transform_3(%arg0: i32) -> (i32, i32) {
    %c0_i32 = arith.constant 0 : i32
    %c0_i32_0 = arith.constant 0 : i32
    return %arg0, %c0_i32 : i32, i32
  }
  func.func @transform_4(%arg0: i32) -> (i32, i32) {
    %c0_i32 = arith.constant 0 : i32
    %c0_i32_0 = arith.constant 0 : i32
    return %arg0, %c0_i32 : i32, i32
  }
}

</mosaic_0001>

<llo_original>
// kernel: sgat_forward.2
$region0: #{sgat_forward.2}
  #allocation0 [shape = 'u32[]', space=smem, size = 0x4, offset = 0x4, fixed_abs, tag = 'smem constant byte address 0x4 - core index']
  #allocation1 [shape = 'u32[72,128]{1,0:T(1,128)}', space=vmem, size = 0x9000, scoped, tag = 'internal scratch']
  %s0 = inlined_call_operand.hbm [shape: f32[512,128], index: 0, kind: input, shape index: {}]
  %s1 = inlined_call_operand.vmem [shape: f32[128,128], index: 1, kind: input, shape index: {}]
  %s2 = inlined_call_operand.vmem [shape: f32[2,128], index: 2, kind: input, shape index: {}]
  %s3 = inlined_call_operand.vmem [shape: f32[512,128], index: 3, kind: output, shape index: {0}]
  %s4 = inlined_call_operand.vmem [shape: f32[2,512], index: 4, kind: output, shape index: {1}]
  %5 = xla_tuple %s3, %s4
  %s6 = sld [smem:[#allocation0]]
  $region57: #{sgat_forward.2} parent=0
    _
  %s8 = ssub.s32 1, %s6
  %s9 = scalar_select 0, %s8, %s6
  $region1: #{sgat_forward.2} parent=0
    #allocation2 [shape = 'u8[262144]{0}', space=vmem, size = 0x40000, scoped, tag = 'input window, operand 0']
    #allocation3 [shape = 's32[2]{0}', space=sflag, size = 0x8, scoped, tag = 'scoped memory for sgat_forward.2']
    %10 = vsyncpa [#allocation3], 0
    %s11 = scalar_lea.sflag [#allocation3], 1
    %12 = vsyncpa %s11, 0
    loop: start=0, step=1, limit=4
    $region2: #{sgat_forward.2} parent=1 // loop_pre_header
      _
    $region3: #{sgat_forward.2} parent=1 // loop_header
      %s14 = sphi 0, %s18
      %p15 = scmp.ge.s32.totalorder %s14, 4
      %s24 = sphi 0, %s26
      %s27 = sphi 0, %s24
      %s28 = sphi 0, %s27
      %s44 = sphi 0, %s28
      %s48 = sphi 0, %s48
      %s50 = sphi 0, %s48
      %s51 = sphi 0, %s50
      %s65 = sphi 0, %s51
      %s69 = sphi 0, %s69
      %s71 = sphi 0, %s69
      %s72 = sphi 0, %s71
      %s86 = sphi 0, %s72
      %s92 = sphi 0, %s94
      %s95 = sphi 0, %s92
      %s96 = sphi 0, %s95
      %s112 = sphi 0, %s96
      %s118 = sphi 0, %s120
      %s121 = sphi 0, %s118
      %s122 = sphi 0, %s121
      %s138 = sphi 0, %s122
    $region4: #{sgat_forward.2} parent=1 // loop_header_branch
      %17 = sbr.rel (%p15) target = $region8
    $region5: #{sgat_forward.2} parent=1 // loop_body
      %s19 = ssub.s32 %s14, 1
      %s20 = ssub.s32 %s14, 2
      %s21 = sadd.s32 %s14, 1
      %s22 = ssub.s32 %s14, %s21
      %p23 = scmp.eq.s32.totalorder %s22, 0
      %s25 = sadd.s32 %s24, 1
      %s26 = scalar_select %p23, %s24, %s25
      %p29 = pneg %p23
      %p30 = scmp.eq.s32.totalorder %s14, 1
      %p31 = por %p29, %p30
      %p32 = scmp.ne.s32.totalorder %s24, %s27
      %p33 = scmp.eq.s32.totalorder %s14, 0
      %p34 = por %p32, %p33
      %p35 = scmp.ne.s32.totalorder %s24, %s27
      %p36 = scmp.eq.s32.totalorder %s19, 1
      %p37 = por %p35, %p36
      %p38 = scmp.ne.s32.totalorder %s27, %s28
      %p39 = scmp.eq.s32.totalorder %s19, 0
      %p40 = por %p38, %p39
      %p41 = scmp.ne.s32.totalorder %s27, %s28
      %p42 = scmp.eq.s32.totalorder %s20, 1
      %p43 = por %p41, %p42
      %p45 = scmp.ne.s32.totalorder %s28, %s44
      %p46 = scmp.eq.s32.totalorder %s20, 0
      %p47 = por %p45, %p46
      %s49 = sadd.s32 %s48, 1
      %p52 = scmp.eq.s32.totalorder %s14, 1
      %p53 = scmp.ne.s32.totalorder %s48, %s50
      %p54 = scmp.eq.s32.totalorder %s14, 0
      %p55 = por %p53, %p54
      %p56 = scmp.ne.s32.totalorder %s48, %s50
      %p57 = scmp.eq.s32.totalorder %s19, 1
      %p58 = por %p56, %p57
      %p59 = scmp.ne.s32.totalorder %s50, %s51
      %p60 = scmp.eq.s32.totalorder %s19, 0
      %p61 = por %p59, %p60
      %p62 = scmp.ne.s32.totalorder %s50, %s51
      %p63 = scmp.eq.s32.totalorder %s20, 1
      %p64 = por %p62, %p63
      %p66 = scmp.ne.s32.totalorder %s51, %s65
      %p67 = scmp.eq.s32.totalorder %s20, 0
      %p68 = por %p66, %p67
      %s70 = sadd.s32 %s69, 1
      %p73 = scmp.eq.s32.totalorder %s14, 1
      %p74 = scmp.ne.s32.totalorder %s69, %s71
      %p75 = scmp.eq.s32.totalorder %s14, 0
      %p76 = por %p74, %p75
      %p77 = scmp.ne.s32.totalorder %s69, %s71
      %p78 = scmp.eq.s32.totalorder %s19, 1
      %p79 = por %p77, %p78
      %p80 = scmp.ne.s32.totalorder %s71, %s72
      %p81 = scmp.eq.s32.totalorder %s19, 0
      %p82 = por %p80, %p81
      %p83 = scmp.ne.s32.totalorder %s71, %s72
      %p84 = scmp.eq.s32.totalorder %s20, 1
      %p85 = por %p83, %p84
      %p87 = scmp.ne.s32.totalorder %s72, %s86
      %p88 = scmp.eq.s32.totalorder %s20, 0
      %p89 = por %p87, %p88
      %s90 = ssub.s32 %s14, %s21
      %p91 = scmp.eq.s32.totalorder %s90, 0
      %s93 = sadd.s32 %s92, 1
      %s94 = scalar_select %p91, %s92, %s93
      %p97 = pneg %p91
      %p98 = scmp.eq.s32.totalorder %s14, 1
      %p99 = por %p97, %p98
      %p100 = scmp.ne.s32.totalorder %s92, %s95
      %p101 = scmp.eq.s32.totalorder %s14, 0
      %p102 = por %p100, %p101
      %p103 = scmp.ne.s32.totalorder %s92, %s95
      %p104 = scmp.eq.s32.totalorder %s19, 1
      %p105 = por %p103, %p104
      %p106 = scmp.ne.s32.totalorder %s95, %s96
      %p107 = scmp.eq.s32.totalorder %s19, 0
      %p108 = por %p106, %p107
      %p109 = scmp.ne.s32.totalorder %s95, %s96
      %p110 = scmp.eq.s32.totalorder %s20, 1
      %p111 = por %p109, %p110
      %p113 = scmp.ne.s32.totalorder %s96, %s112
      %p114 = scmp.eq.s32.totalorder %s20, 0
      %p115 = por %p113, %p114
      %s116 = ssub.s32 %s14, %s21
      %p117 = scmp.eq.s32.totalorder %s116, 0
      %s119 = sadd.s32 %s118, 1
      %s120 = scalar_select %p117, %s118, %s119
      %p123 = pneg %p117
      %p124 = scmp.eq.s32.totalorder %s14, 1
      %p125 = por %p123, %p124
      %p126 = scmp.ne.s32.totalorder %s118, %s121
      %p127 = scmp.eq.s32.totalorder %s14, 0
      %p128 = por %p126, %p127
      %p129 = scmp.ne.s32.totalorder %s118, %s121
      %p130 = scmp.eq.s32.totalorder %s19, 1
      %p131 = por %p129, %p130
      %p132 = scmp.ne.s32.totalorder %s121, %s122
      %p133 = scmp.eq.s32.totalorder %s19, 0
      %p134 = por %p132, %p133
      %p135 = scmp.ne.s32.totalorder %s121, %s122
      %p136 = scmp.eq.s32.totalorder %s20, 1
      %p137 = por %p135, %p136
      %p139 = scmp.ne.s32.totalorder %s122, %s138
      %p140 = scmp.eq.s32.totalorder %s20, 0
      %p141 = por %p139, %p140
      %p142 = scmp.le.s32.totalorder 1, %s14
      %p143 = scmp.lt.s32.totalorder %s14, 3
      %p144 = pnand %p142, %p143
      %p145 = pneg %p144
      // Predicated region
      $region9: #{sgat_forward.2} parent=5 // pred_check
        _
      $region10: #{sgat_forward.2} parent=5 // pred_check_branch
        %147 = sbr.rel (%p144) target = $region12
      $region11: #{sgat_forward.2} parent=5 // pred_region
        %s148 = ssub.s32 %s14, 1
        // Predicated region
        $region13: #{sgat_forward.2} parent=11 // pred_check
          %p149 = pneg %p61
        $region14: #{sgat_forward.2} parent=11 // pred_check_branch
          %151 = sbr.rel (%p149) target = $region16
        $region15: #{sgat_forward.2} parent=11 // pred_region
          _
        $region16: #{sgat_forward.2} parent=11 // pred_fallthru
          _
        // Predicated region
        $region17: #{sgat_forward.2} parent=11 // pred_check
          %p152 = pneg %p82
        $region18: #{sgat_forward.2} parent=11 // pred_check_branch
          %154 = sbr.rel (%p152) target = $region20
        $region19: #{sgat_forward.2} parent=11 // pred_region
          _
        $region20: #{sgat_forward.2} parent=11 // pred_fallthru
          _
      $region12: #{sgat_forward.2} parent=5 // pred_fallthru
        _
      %p155 = scmp.lt.s32.totalorder %s14, 2
      // Predicated region
      $region21: #{sgat_forward.2} parent=5 // pred_check
        %p156 = pneg %p155
      $region22: #{sgat_forward.2} parent=5 // pred_check_branch
        %158 = sbr.rel (%p156) target = $region24
      $region23: #{sgat_forward.2} parent=5 // pred_region
        // Predicated region
        $region25: #{sgat_forward.2} parent=23 // pred_check
          %p159 = pneg %p34
        $region26: #{sgat_forward.2} parent=23 // pred_check_branch
          %161 = sbr.rel (%p159) target = $region28
        $region27: #{sgat_forward.2} parent=23 // pred_region
          %s162 = sand.u32 %s24, 1
          %s163 = scalar_lea.sflag [#allocation3], %s162
          %s164 = sand.u32 %s24, 1
          %s165 = smul.addr %s164, 256
          %s166 = scalar_lea.vmem [#allocation2], %s165
          %s167 = smul.u32 32, %s14
          %169 = vsyncadd %s163, 0
          %s170 = smul.addr %s167, 8
          %s171 = scalar_lea.hbm %s0, %s170
          %s172 = sshll.u32 %s171, 4
          %s173 = int_to_ptr.hbm [resolvable:$true] %s172
          %s174 = sshll.u32 %s166, 4
          %s175 = int_to_ptr.vmem [resolvable:$true] %s174
          %180 = dma.hbm_to_vmem [thread:$0]  %s173, 4096, %s175, %s163, 128, 128, 8
        $region28: #{sgat_forward.2} parent=23 // pred_fallthru
          _
      $region24: #{sgat_forward.2} parent=5 // pred_fallthru
        _
      %p181 = scmp.le.s32.totalorder 1, %s14
      %p182 = scmp.lt.s32.totalorder %s14, 3
      %p183 = pnand %p181, %p182
      %p184 = pneg %p183
      // Predicated region
      $region29: #{sgat_forward.2} parent=5 // pred_check
        _
      $region30: #{sgat_forward.2} parent=5 // pred_check_branch
        %186 = sbr.rel (%p183) target = $region32
      $region31: #{sgat_forward.2} parent=5 // pred_region
        %s187 = ssub.s32 %s14, 1
        %s188 = sand.u32 %s27, 1
        %s189 = scalar_lea.sflag [#allocation3], %s188
        %s190 = sand.u32 %s27, 1
        %s191 = smul.addr %s190, 256
        %s192 = scalar_lea.vmem [#allocation2], %s191
        // Predicated region
        $region33: #{sgat_forward.2} parent=31 // pred_check
          %p193 = pneg %p40
        $region34: #{sgat_forward.2} parent=31 // pred_check_branch
          %195 = sbr.rel (%p193) target = $region36
        $region35: #{sgat_forward.2} parent=31 // pred_region
          %197 = dma.done %s189, 4096
        $region36: #{sgat_forward.2} parent=31 // pred_fallthru
          _
        %s198 = sand.u32 %s27, 1
        %s199 = scalar_lea.sflag [#allocation3], %s198
        %s200 = sand.u32 %s27, 1
        %s201 = smul.addr %s200, 256
        %s202 = scalar_lea.vmem [#allocation2], %s201
        %p203 = pneg %p40
        %p204 = pneg %p37
        %p205 = pneg %p61
        %p206 = pneg %p58
        %p207 = pneg %p82
        %p208 = pneg %p79
        %p209 = pneg %p108
        %p210 = pneg %p105
        %s211 = smul.u32 32, %s19
        %p212 = scmp.lt.s32.totalorder %s211, 63
        %s213 = scalar_select %p212, %s211, 63
        %s214 = smul.addr %s213, 8
        %s215 = scalar_lea.vmem %s3, %s214
        %p216 = pneg %p134
        %p217 = pneg %p131
        %s218 = smul.u32 2, %s19
        %p219 = scmp.lt.s32.totalorder %s218, 3
        %s220 = scalar_select %p219, %s218, 3
        %s221 = smul.addr %s220, 2
        %s222 = scalar_lea.vmem %s4, %s221
        %s223 = smul.u32 32, %s19
        %s224 = smul.u32 32, %s19
        %p225 = scmp.lt.s32.totalorder %s224, 63
        %s226 = scalar_select %p225, %s224, 63
        %s227 = smul.addr %s226, 8
        %s228 = scalar_lea.vmem %s3, %s227
        %s229 = smul.u32 32, %s19
        %s230 = smul.u32 2, %s19
        %p231 = scmp.lt.s32.totalorder %s230, 3
        %s232 = scalar_select %p231, %s230, 3
        %s233 = smul.addr %s232, 2
        %s234 = scalar_lea.vmem %s4, %s233
        %s235 = smul.u32 2, %s19
        %v236 = vld [vmem:[%s192] sm:$0xff]
        %v237 = vld [vmem:[%s192 + $0x8] sm:$0xff]
        %v238 = vld [vmem:[%s192 + $0x10] sm:$0xff]
        %v239 = vld [vmem:[%s192 + $0x18] sm:$0xff]
        %v240 = vld [vmem:[%s192 + $0x20] sm:$0xff]
        %v241 = vld [vmem:[%s192 + $0x28] sm:$0xff]
        %v242 = vld [vmem:[%s192 + $0x30] sm:$0xff]
        %v243 = vld [vmem:[%s192 + $0x38] sm:$0xff]
        %v244 = vld [vmem:[%s192 + $0x40] sm:$0xff]
        %v245 = vld [vmem:[%s192 + $0x48] sm:$0xff]
        %v246 = vld [vmem:[%s192 + $0x50] sm:$0xff]
        %v247 = vld [vmem:[%s192 + $0x58] sm:$0xff]
        %v248 = vld [vmem:[%s192 + $0x60] sm:$0xff]
        %v249 = vld [vmem:[%s192 + $0x68] sm:$0xff]
        %v250 = vld [vmem:[%s192 + $0x70] sm:$0xff]
        %v251 = vld [vmem:[%s192 + $0x78] sm:$0xff]
        %v252 = vld [vmem:[%s192 + $0x80] sm:$0xff]
        %v253 = vld [vmem:[%s192 + $0x88] sm:$0xff]
        %v254 = vld [vmem:[%s192 + $0x90] sm:$0xff]
        %v255 = vld [vmem:[%s192 + $0x98] sm:$0xff]
        %v256 = vld [vmem:[%s192 + $0xa0] sm:$0xff]
        %v257 = vld [vmem:[%s192 + $0xa8] sm:$0xff]
        %v258 = vld [vmem:[%s192 + $0xb0] sm:$0xff]
        %v259 = vld [vmem:[%s192 + $0xb8] sm:$0xff]
        %v260 = vld [vmem:[%s192 + $0xc0] sm:$0xff]
        %v261 = vld [vmem:[%s192 + $0xc8] sm:$0xff]
        %v262 = vld [vmem:[%s192 + $0xd0] sm:$0xff]
        %v263 = vld [vmem:[%s192 + $0xd8] sm:$0xff]
        %v264 = vld [vmem:[%s192 + $0xe0] sm:$0xff]
        %v265 = vld [vmem:[%s192 + $0xe8] sm:$0xff]
        %v266 = vld [vmem:[%s192 + $0xf0] sm:$0xff]
        %v267 = vld [vmem:[%s192 + $0xf8] sm:$0xff]
        %v268 = vld [vmem:[%s1] sm:$0xff]
        %v269 = vld [vmem:[%s1 + $0x8] sm:$0xff]
        %v270 = vld [vmem:[%s1 + $0x10] sm:$0xff]
        %v271 = vld [vmem:[%s1 + $0x18] sm:$0xff]
        %v272 = vld [vmem:[%s1 + $0x20] sm:$0xff]
        %v273 = vld [vmem:[%s1 + $0x28] sm:$0xff]
        %v274 = vld [vmem:[%s1 + $0x30] sm:$0xff]
        %v275 = vld [vmem:[%s1 + $0x38] sm:$0xff]
        %v276 = vld [vmem:[%s1 + $0x40] sm:$0xff]
        %v277 = vld [vmem:[%s1 + $0x48] sm:$0xff]
        %v278 = vld [vmem:[%s1 + $0x50] sm:$0xff]
        %v279 = vld [vmem:[%s1 + $0x58] sm:$0xff]
        %v280 = vld [vmem:[%s1 + $0x60] sm:$0xff]
        %v281 = vld [vmem:[%s1 + $0x68] sm:$0xff]
        %v282 = vld [vmem:[%s1 + $0x70] sm:$0xff]
        %v283 = vld [vmem:[%s1 + $0x78] sm:$0xff]
        %284 = vmatpush.msra.mxu0 %v283
        %285 = vmatpush.msra.mxu0 %v282
        %286 = vmatpush.msra.mxu0 %v281
        %287 = vmatpush.msra.mxu0 %v280
        %288 = vmatpush.msra.mxu0 %v279
        %289 = vmatpush.msra.mxu0 %v278
        %290 = vmatpush.msra.mxu0 %v277
        %291 = vmatpush.msra.mxu0 %v276
        %292 = vmatpush.msra.mxu0 %v275
        %293 = vmatpush.msra.mxu0 %v274
        %294 = vmatpush.msra.mxu0 %v273
        %295 = vmatpush.msra.mxu0 %v272
        %296 = vmatpush.msra.mxu0 %v271
        %297 = vmatpush.msra.mxu0 %v270
        %298 = vmatpush.msra.mxu0 %v269
        %299 = vmatpush.msra.mxu0 %v268
        %300 = vmatmul.f32.gmra.mxu0 %v236
        %v301 = vpop.f32.mrf.mxu0
        %v302 = vadd.f32 0.0, %v301
        %303 = vmatmul.f32.gmra.mxu0 %v237
        %v304 = vpop.f32.mrf.mxu0
        %v305 = vadd.f32 0.0, %v304
        %306 = vmatmul.f32.gmra.mxu0 %v238
        %v307 = vpop.f32.mrf.mxu0
        %v308 = vadd.f32 0.0, %v307
        %309 = vmatmul.f32.gmra.mxu0 %v239
        %v310 = vpop.f32.mrf.mxu0
        %v311 = vadd.f32 0.0, %v310
        %312 = vmatmul.f32.gmra.mxu0 %v240
        %v313 = vpop.f32.mrf.mxu0
        %v314 = vadd.f32 0.0, %v313
        %315 = vmatmul.f32.gmra.mxu0 %v241
        %v316 = vpop.f32.mrf.mxu0
        %v317 = vadd.f32 0.0, %v316
        %318 = vmatmul.f32.gmra.mxu0 %v242
        %v319 = vpop.f32.mrf.mxu0
        %v320 = vadd.f32 0.0, %v319
        %321 = vmatmul.f32.gmra.mxu0 %v243
        %v322 = vpop.f32.mrf.mxu0
        %v323 = vadd.f32 0.0, %v322
        %324 = vmatmul.f32.gmra.mxu0 %v244
        %v325 = vpop.f32.mrf.mxu0
        %v326 = vadd.f32 0.0, %v325
        %327 = vmatmul.f32.gmra.mxu0 %v245
        %v328 = vpop.f32.mrf.mxu0
        %v329 = vadd.f32 0.0, %v328
        %330 = vmatmul.f32.gmra.mxu0 %v246
        %v331 = vpop.f32.mrf.mxu0
        %v332 = vadd.f32 0.0, %v331
        %333 = vmatmul.f32.gmra.mxu0 %v247
        %v334 = vpop.f32.mrf.mxu0
        %v335 = vadd.f32 0.0, %v334
        %336 = vmatmul.f32.gmra.mxu0 %v248
        %v337 = vpop.f32.mrf.mxu0
        %v338 = vadd.f32 0.0, %v337
        %339 = vmatmul.f32.gmra.mxu0 %v249
        %v340 = vpop.f32.mrf.mxu0
        %v341 = vadd.f32 0.0, %v340
        %342 = vmatmul.f32.gmra.mxu0 %v250
        %v343 = vpop.f32.mrf.mxu0
        %v344 = vadd.f32 0.0, %v343
        %345 = vmatmul.f32.gmra.mxu0 %v251
        %v346 = vpop.f32.mrf.mxu0
        %v347 = vadd.f32 0.0, %v346
        %348 = vmatmul.f32.gmra.mxu0 %v252
        %v349 = vpop.f32.mrf.mxu0
        %v350 = vadd.f32 0.0, %v349
        %351 = vmatmul.f32.gmra.mxu0 %v253
        %v352 = vpop.f32.mrf.mxu0
        %v353 = vadd.f32 0.0, %v352
        %354 = vmatmul.f32.gmra.mxu0 %v254
        %v355 = vpop.f32.mrf.mxu0
        %v356 = vadd.f32 0.0, %v355
        %357 = vmatmul.f32.gmra.mxu0 %v255
        %v358 = vpop.f32.mrf.mxu0
        %v359 = vadd.f32 0.0, %v358
        %360 = vmatmul.f32.gmra.mxu0 %v256
        %v361 = vpop.f32.mrf.mxu0
        %v362 = vadd.f32 0.0, %v361
        %363 = vmatmul.f32.gmra.mxu0 %v257
        %v364 = vpop.f32.mrf.mxu0
        %v365 = vadd.f32 0.0, %v364
        %366 = vmatmul.f32.gmra.mxu0 %v258
        %v367 = vpop.f32.mrf.mxu0
        %v368 = vadd.f32 0.0, %v367
        %369 = vmatmul.f32.gmra.mxu0 %v259
        %v370 = vpop.f32.mrf.mxu0
        %v371 = vadd.f32 0.0, %v370
        %372 = vmatmul.f32.gmra.mxu0 %v260
        %v373 = vpop.f32.mrf.mxu0
        %v374 = vadd.f32 0.0, %v373
        %375 = vmatmul.f32.gmra.mxu0 %v261
        %v376 = vpop.f32.mrf.mxu0
        %v377 = vadd.f32 0.0, %v376
        %378 = vmatmul.f32.gmra.mxu0 %v262
        %v379 = vpop.f32.mrf.mxu0
        %v380 = vadd.f32 0.0, %v379
        %381 = vmatmul.f32.gmra.mxu0 %v263
        %v382 = vpop.f32.mrf.mxu0
        %v383 = vadd.f32 0.0, %v382
        %384 = vmatmul.f32.gmra.mxu0 %v264
        %v385 = vpop.f32.mrf.mxu0
        %v386 = vadd.f32 0.0, %v385
        %387 = vmatmul.f32.gmra.mxu0 %v265
        %v388 = vpop.f32.mrf.mxu0
        %v389 = vadd.f32 0.0, %v388
        %390 = vmatmul.f32.gmra.mxu0 %v266
        %v391 = vpop.f32.mrf.mxu0
        %v392 = vadd.f32 0.0, %v391
        %393 = vmatmul.f32.gmra.mxu0 %v267
        %v394 = vpop.f32.mrf.mxu0
        %v395 = vadd.f32 0.0, %v394
        %396 = vdwg.mxu0
        %397 = vst [vmem:[%s228] sm:$0xff] %v302
        %398 = vst [vmem:[%s228 + $0x8] sm:$0xff] %v305
        %399 = vst [vmem:[%s228 + $0x10] sm:$0xff] %v308
        %400 = vst [vmem:[%s228 + $0x18] sm:$0xff] %v311
        %401 = vst [vmem:[%s228 + $0x20] sm:$0xff] %v314
        %402 = vst [vmem:[%s228 + $0x28] sm:$0xff] %v317
        %403 = vst [vmem:[%s228 + $0x30] sm:$0xff] %v320
        %404 = vst [vmem:[%s228 + $0x38] sm:$0xff] %v323
        %405 = vst [vmem:[%s228 + $0x40] sm:$0xff] %v326
        %406 = vst [vmem:[%s228 + $0x48] sm:$0xff] %v329
        %407 = vst [vmem:[%s228 + $0x50] sm:$0xff] %v332
        %408 = vst [vmem:[%s228 + $0x58] sm:$0xff] %v335
        %409 = vst [vmem:[%s228 + $0x60] sm:$0xff] %v338
        %410 = vst [vmem:[%s228 + $0x68] sm:$0xff] %v341
        %411 = vst [vmem:[%s228 + $0x70] sm:$0xff] %v344
        %412 = vst [vmem:[%s228 + $0x78] sm:$0xff] %v347
        %413 = vst [vmem:[%s228 + $0x80] sm:$0xff] %v350
        %414 = vst [vmem:[%s228 + $0x88] sm:$0xff] %v353
        %415 = vst [vmem:[%s228 + $0x90] sm:$0xff] %v356
        %416 = vst [vmem:[%s228 + $0x98] sm:$0xff] %v359
        %417 = vst [vmem:[%s228 + $0xa0] sm:$0xff] %v362
        %418 = vst [vmem:[%s228 + $0xa8] sm:$0xff] %v365
        %419 = vst [vmem:[%s228 + $0xb0] sm:$0xff] %v368
        %420 = vst [vmem:[%s228 + $0xb8] sm:$0xff] %v371
        %421 = vst [vmem:[%s228 + $0xc0] sm:$0xff] %v374
        %422 = vst [vmem:[%s228 + $0xc8] sm:$0xff] %v377
        %423 = vst [vmem:[%s228 + $0xd0] sm:$0xff] %v380
        %424 = vst [vmem:[%s228 + $0xd8] sm:$0xff] %v383
        %425 = vst [vmem:[%s228 + $0xe0] sm:$0xff] %v386
        %426 = vst [vmem:[%s228 + $0xe8] sm:$0xff] %v389
        %427 = vst [vmem:[%s228 + $0xf0] sm:$0xff] %v392
        %428 = vst [vmem:[%s228 + $0xf8] sm:$0xff] %v395
        %v429 = vld [vmem:[%s2] sm:$0x3]
        %430 = vmatpush.xpose.msra.mxu0 %v347
        %431 = vmatpush.xpose.msra.mxu0 %v344
        %432 = vmatpush.xpose.msra.mxu0 %v341
        %433 = vmatpush.xpose.msra.mxu0 %v338
        %434 = vmatpush.xpose.msra.mxu0 %v335
        %435 = vmatpush.xpose.msra.mxu0 %v332
        %436 = vmatpush.xpose.msra.mxu0 %v329
        %437 = vmatpush.xpose.msra.mxu0 %v326
        %438 = vmatpush.xpose.msra.mxu0 %v323
        %439 = vmatpush.xpose.msra.mxu0 %v320
        %440 = vmatpush.xpose.msra.mxu0 %v317
        %441 = vmatpush.xpose.msra.mxu0 %v314
        %442 = vmatpush.xpose.msra.mxu0 %v311
        %443 = vmatpush.xpose.msra.mxu0 %v308
        %444 = vmatpush.xpose.msra.mxu0 %v305
        %445 = vmatpush.xpose.msra.mxu0 %v302
        %446 = vmatmul.f32.gmra.mxu0 %v429
        %v447 = vpop.f32.mrf.mxu0
        %v448 = vadd.f32 0.0, %v447
        %449 = vdwg.mxu0
        %450 = vmatpush.xpose.msra.mxu0 %v395
        %451 = vmatpush.xpose.msra.mxu0 %v392
        %452 = vmatpush.xpose.msra.mxu0 %v389
        %453 = vmatpush.xpose.msra.mxu0 %v386
        %454 = vmatpush.xpose.msra.mxu0 %v383
        %455 = vmatpush.xpose.msra.mxu0 %v380
        %456 = vmatpush.xpose.msra.mxu0 %v377
        %457 = vmatpush.xpose.msra.mxu0 %v374
        %458 = vmatpush.xpose.msra.mxu0 %v371
        %459 = vmatpush.xpose.msra.mxu0 %v368
        %460 = vmatpush.xpose.msra.mxu0 %v365
        %461 = vmatpush.xpose.msra.mxu0 %v362
        %462 = vmatpush.xpose.msra.mxu0 %v359
        %463 = vmatpush.xpose.msra.mxu0 %v356
        %464 = vmatpush.xpose.msra.mxu0 %v353
        %465 = vmatpush.xpose.msra.mxu0 %v350
        %466 = vmatmul.f32.gmra.mxu0 %v429
        %v467 = vpop.f32.mrf.mxu0
        %v468 = vadd.f32 0.0, %v467
        %469 = vdwg.mxu0
        %v472 = vrot.slane %v468, 6
        %vm473 = vcmask 1041408
        %v474 = vsel %vm473, %v448, %v472
        %476 = vst [vmem:[%s234] sm:$0xf] %v474
        %s477 = smul.u32 32, %s19
        %p478 = scmp.lt.s32.totalorder %s477, 63
        %s479 = scalar_select %p478, %s477, 63
        %s480 = smul.addr %s479, 8
        %s481 = scalar_lea.vmem %s3, %s480
        %s482 = smul.u32 2, %s19
        %p483 = scmp.lt.s32.totalorder %s482, 3
        %s484 = scalar_select %p483, %s482, 3
        %s485 = smul.addr %s484, 2
        %s486 = scalar_lea.vmem %s4, %s485
        // Predicated region
        $region37: #{sgat_forward.2} parent=31 // pred_check
          %p487 = pneg %p105
        $region38: #{sgat_forward.2} parent=31 // pred_check_branch
          %489 = sbr.rel (%p487) target = $region40
        $region39: #{sgat_forward.2} parent=31 // pred_region
          %s490 = smul.u32 32, %s19
        $region40: #{sgat_forward.2} parent=31 // pred_fallthru
          _
        // Predicated region
        $region41: #{sgat_forward.2} parent=31 // pred_check
          %p491 = pneg %p131
        $region42: #{sgat_forward.2} parent=31 // pred_check_branch
          %493 = sbr.rel (%p491) target = $region44
        $region43: #{sgat_forward.2} parent=31 // pred_region
          %s494 = smul.u32 2, %s19
        $region44: #{sgat_forward.2} parent=31 // pred_fallthru
          _
      $region32: #{sgat_forward.2} parent=5 // pred_fallthru
        _
      %p495 = scmp.le.s32.totalorder 2, %s14
      // Predicated region
      $region45: #{sgat_forward.2} parent=5 // pred_check
        %p496 = pneg %p495
      $region46: #{sgat_forward.2} parent=5 // pred_check_branch
        %498 = sbr.rel (%p496) target = $region48
      $region47: #{sgat_forward.2} parent=5 // pred_region
        %s499 = ssub.s32 %s14, 2
        // Predicated region
        $region49: #{sgat_forward.2} parent=47 // pred_check
          %p500 = pneg %p111
        $region50: #{sgat_forward.2} parent=47 // pred_check_branch
          %502 = sbr.rel (%p500) target = $region52
        $region51: #{sgat_forward.2} parent=47 // pred_region
          %s503 = smul.u32 32, %s20
          %p504 = scmp.lt.s32.totalorder %s503, 63
          %s505 = scalar_select %p504, %s503, 63
          %s506 = smul.addr %s505, 8
          %s507 = scalar_lea.vmem %s3, %s506
        $region52: #{sgat_forward.2} parent=47 // pred_fallthru
          _
        // Predicated region
        $region53: #{sgat_forward.2} parent=47 // pred_check
          %p508 = pneg %p137
        $region54: #{sgat_forward.2} parent=47 // pred_check_branch
          %510 = sbr.rel (%p508) target = $region56
        $region55: #{sgat_forward.2} parent=47 // pred_region
          %s511 = smul.u32 2, %s20
          %p512 = scmp.lt.s32.totalorder %s511, 3
          %s513 = scalar_select %p512, %s511, 3
          %s514 = smul.addr %s513, 2
          %s515 = scalar_lea.vmem %s4, %s514
        $region56: #{sgat_forward.2} parent=47 // pred_fallthru
          _
      $region48: #{sgat_forward.2} parent=5 // pred_fallthru
        _
    $region6: #{sgat_forward.2} parent=1 // loop_footer
      %s18 = sadd.s32 1, %s14
    $region7: #{sgat_forward.2} parent=1 // loop_footer_branch
      %13 = sbr.rel target = $region3
    $region8: #{sgat_forward.2} parent=1 // loop_exit
      _
    %516 = vsyncpa [#allocation3], 1
    %s517 = scalar_lea.sflag [#allocation3], 1
    %518 = vsyncpa %s517, 1

// kernel: sgat_forward.3
$region0: #{sgat_forward.3}
  #allocation0 [shape = 'u32[]', space=smem, size = 0x4, offset = 0x4, fixed_abs, tag = 'smem constant byte address 0x4 - core index']
  #allocation1 [shape = 'u32[72,128]{1,0:T(1,128)}', space=vmem, size = 0x9000, scoped, tag = 'internal scratch']
  %s0 = inlined_call_operand.vmem [shape: f32[256,1], index: 0, kind: input, shape index: {}]
  %s1 = inlined_call_operand.vmem [shape: f32[1,512], index: 1, kind: input, shape index: {}]
  %s2 = inlined_call_operand.vmem [shape: f32[512,128], index: 2, kind: input, shape index: {}]
  %s3 = inlined_call_operand.vmem [shape: f32[256,512], index: 3, kind: input, shape index: {}]
  %s4 = inlined_call_operand.hbm [shape: f32[256,128], index: 4, kind: output, shape index: {}]
  %s5 = sld [smem:[#allocation0]]
  $region49: #{sgat_forward.3} parent=0
    _
  %s7 = ssub.s32 1, %s5
  %s8 = scalar_select 0, %s7, %s5
  $region1: #{sgat_forward.3} parent=0
    #allocation2 [shape = 'u8[131072]{0}', space=vmem, size = 0x20000, scoped, tag = 'output window, operand 0']
    #allocation3 [shape = 's32[2]{0}', space=sflag, size = 0x8, scoped, tag = 'scoped memory for sgat_forward.3']
    %9 = vsyncpa [#allocation3], 0
    %s10 = scalar_lea.sflag [#allocation3], 1
    %11 = vsyncpa %s10, 0
    loop: start=0, step=1, limit=4
    $region2: #{sgat_forward.3} parent=1 // loop_pre_header
      _
    $region3: #{sgat_forward.3} parent=1 // loop_header
      %s13 = sphi 0, %s17
      %p14 = scmp.ge.s32.totalorder %s13, 4
      %s23 = sphi 0, %s25
      %s26 = sphi 0, %s23
      %s27 = sphi 0, %s26
      %s43 = sphi 0, %s27
      %s47 = sphi 0, %s47
      %s49 = sphi 0, %s47
      %s50 = sphi 0, %s49
      %s64 = sphi 0, %s50
      %s68 = sphi 0, %s68
      %s70 = sphi 0, %s68
      %s71 = sphi 0, %s70
      %s85 = sphi 0, %s71
      %s91 = sphi 0, %s93
      %s94 = sphi 0, %s91
      %s95 = sphi 0, %s94
      %s111 = sphi 0, %s95
      %s117 = sphi 0, %s119
      %s120 = sphi 0, %s117
      %s121 = sphi 0, %s120
      %s137 = sphi 0, %s121
    $region4: #{sgat_forward.3} parent=1 // loop_header_branch
      %16 = sbr.rel (%p14) target = $region8
    $region5: #{sgat_forward.3} parent=1 // loop_body
      %s18 = ssub.s32 %s13, 1
      %s19 = ssub.s32 %s13, 2
      %s20 = sadd.s32 %s13, 1
      %s21 = ssub.s32 %s13, %s20
      %p22 = scmp.eq.s32.totalorder %s21, 0
      %s24 = sadd.s32 %s23, 1
      %s25 = scalar_select %p22, %s23, %s24
      %p28 = pneg %p22
      %p29 = scmp.eq.s32.totalorder %s13, 1
      %p30 = por %p28, %p29
      %p31 = scmp.ne.s32.totalorder %s23, %s26
      %p32 = scmp.eq.s32.totalorder %s13, 0
      %p33 = por %p31, %p32
      %p34 = scmp.ne.s32.totalorder %s23, %s26
      %p35 = scmp.eq.s32.totalorder %s18, 1
      %p36 = por %p34, %p35
      %p37 = scmp.ne.s32.totalorder %s26, %s27
      %p38 = scmp.eq.s32.totalorder %s18, 0
      %p39 = por %p37, %p38
      %p40 = scmp.ne.s32.totalorder %s26, %s27
      %p41 = scmp.eq.s32.totalorder %s19, 1
      %p42 = por %p40, %p41
      %p44 = scmp.ne.s32.totalorder %s27, %s43
      %p45 = scmp.eq.s32.totalorder %s19, 0
      %p46 = por %p44, %p45
      %s48 = sadd.s32 %s47, 1
      %p51 = scmp.eq.s32.totalorder %s13, 1
      %p52 = scmp.ne.s32.totalorder %s47, %s49
      %p53 = scmp.eq.s32.totalorder %s13, 0
      %p54 = por %p52, %p53
      %p55 = scmp.ne.s32.totalorder %s47, %s49
      %p56 = scmp.eq.s32.totalorder %s18, 1
      %p57 = por %p55, %p56
      %p58 = scmp.ne.s32.totalorder %s49, %s50
      %p59 = scmp.eq.s32.totalorder %s18, 0
      %p60 = por %p58, %p59
      %p61 = scmp.ne.s32.totalorder %s49, %s50
      %p62 = scmp.eq.s32.totalorder %s19, 1
      %p63 = por %p61, %p62
      %p65 = scmp.ne.s32.totalorder %s50, %s64
      %p66 = scmp.eq.s32.totalorder %s19, 0
      %p67 = por %p65, %p66
      %s69 = sadd.s32 %s68, 1
      %p72 = scmp.eq.s32.totalorder %s13, 1
      %p73 = scmp.ne.s32.totalorder %s68, %s70
      %p74 = scmp.eq.s32.totalorder %s13, 0
      %p75 = por %p73, %p74
      %p76 = scmp.ne.s32.totalorder %s68, %s70
      %p77 = scmp.eq.s32.totalorder %s18, 1
      %p78 = por %p76, %p77
      %p79 = scmp.ne.s32.totalorder %s70, %s71
      %p80 = scmp.eq.s32.totalorder %s18, 0
      %p81 = por %p79, %p80
      %p82 = scmp.ne.s32.totalorder %s70, %s71
      %p83 = scmp.eq.s32.totalorder %s19, 1
      %p84 = por %p82, %p83
      %p86 = scmp.ne.s32.totalorder %s71, %s85
      %p87 = scmp.eq.s32.totalorder %s19, 0
      %p88 = por %p86, %p87
      %s89 = ssub.s32 %s13, %s20
      %p90 = scmp.eq.s32.totalorder %s89, 0
      %s92 = sadd.s32 %s91, 1
      %s93 = scalar_select %p90, %s91, %s92
      %p96 = pneg %p90
      %p97 = scmp.eq.s32.totalorder %s13, 1
      %p98 = por %p96, %p97
      %p99 = scmp.ne.s32.totalorder %s91, %s94
      %p100 = scmp.eq.s32.totalorder %s13, 0
      %p101 = por %p99, %p100
      %p102 = scmp.ne.s32.totalorder %s91, %s94
      %p103 = scmp.eq.s32.totalorder %s18, 1
      %p104 = por %p102, %p103
      %p105 = scmp.ne.s32.totalorder %s94, %s95
      %p106 = scmp.eq.s32.totalorder %s18, 0
      %p107 = por %p105, %p106
      %p108 = scmp.ne.s32.totalorder %s94, %s95
      %p109 = scmp.eq.s32.totalorder %s19, 1
      %p110 = por %p108, %p109
      %p112 = scmp.ne.s32.totalorder %s95, %s111
      %p113 = scmp.eq.s32.totalorder %s19, 0
      %p114 = por %p112, %p113
      %s115 = ssub.s32 %s13, %s20
      %p116 = scmp.eq.s32.totalorder %s115, 0
      %s118 = sadd.s32 %s117, 1
      %s119 = scalar_select %p116, %s117, %s118
      %p122 = pneg %p116
      %p123 = scmp.eq.s32.totalorder %s13, 1
      %p124 = por %p122, %p123
      %p125 = scmp.ne.s32.totalorder %s117, %s120
      %p126 = scmp.eq.s32.totalorder %s13, 0
      %p127 = por %p125, %p126
      %p128 = scmp.ne.s32.totalorder %s117, %s120
      %p129 = scmp.eq.s32.totalorder %s18, 1
      %p130 = por %p128, %p129
      %p131 = scmp.ne.s32.totalorder %s120, %s121
      %p132 = scmp.eq.s32.totalorder %s18, 0
      %p133 = por %p131, %p132
      %p134 = scmp.ne.s32.totalorder %s120, %s121
      %p135 = scmp.eq.s32.totalorder %s19, 1
      %p136 = por %p134, %p135
      %p138 = scmp.ne.s32.totalorder %s121, %s137
      %p139 = scmp.eq.s32.totalorder %s19, 0
      %p140 = por %p138, %p139
      %p141 = scmp.le.s32.totalorder 1, %s13
      %p142 = scmp.lt.s32.totalorder %s13, 3
      %p143 = pnand %p141, %p142
      %p144 = pneg %p143
      // Predicated region
      $region9: #{sgat_forward.3} parent=5 // pred_check
        _
      $region10: #{sgat_forward.3} parent=5 // pred_check_branch
        %146 = sbr.rel (%p143) target = $region12
      $region11: #{sgat_forward.3} parent=5 // pred_region
        %s147 = ssub.s32 %s13, 1
        // Predicated region
        $region13: #{sgat_forward.3} parent=11 // pred_check
          %p148 = pneg %p60
        $region14: #{sgat_forward.3} parent=11 // pred_check_branch
          %150 = sbr.rel (%p148) target = $region16
        $region15: #{sgat_forward.3} parent=11 // pred_region
          _
        $region16: #{sgat_forward.3} parent=11 // pred_fallthru
          _
        // Predicated region
        $region17: #{sgat_forward.3} parent=11 // pred_check
          %p151 = pneg %p81
        $region18: #{sgat_forward.3} parent=11 // pred_check_branch
          %153 = sbr.rel (%p151) target = $region20
        $region19: #{sgat_forward.3} parent=11 // pred_region
          _
        $region20: #{sgat_forward.3} parent=11 // pred_fallthru
          _
      $region12: #{sgat_forward.3} parent=5 // pred_fallthru
        _
      %p154 = scmp.lt.s32.totalorder %s13, 2
      // Predicated region
      $region21: #{sgat_forward.3} parent=5 // pred_check
        %p155 = pneg %p154
      $region22: #{sgat_forward.3} parent=5 // pred_check_branch
        %157 = sbr.rel (%p155) target = $region24
      $region23: #{sgat_forward.3} parent=5 // pred_region
        // Predicated region
        $region25: #{sgat_forward.3} parent=23 // pred_check
          %p158 = pneg %p33
        $region26: #{sgat_forward.3} parent=23 // pred_check_branch
          %160 = sbr.rel (%p158) target = $region28
        $region27: #{sgat_forward.3} parent=23 // pred_region
          %s161 = smul.u32 16, %s13
          %p162 = scmp.lt.s32.totalorder %s161, 31
          %s163 = scalar_select %p162, %s161, 31
          %s164 = smul.addr %s163, 8
          %s165 = scalar_lea.vmem %s0, %s164
          %s166 = smul.u32 16, %s13
        $region28: #{sgat_forward.3} parent=23 // pred_fallthru
          _
        // Predicated region
        $region29: #{sgat_forward.3} parent=23 // pred_check
          %p167 = pneg %p101
        $region30: #{sgat_forward.3} parent=23 // pred_check_branch
          %169 = sbr.rel (%p167) target = $region32
        $region31: #{sgat_forward.3} parent=23 // pred_region
          %s170 = smul.u32 16, %s13
          %p171 = scmp.lt.s32.totalorder %s170, 31
          %s172 = scalar_select %p171, %s170, 31
          %s173 = smul.addr %s172, 4
          %s174 = smul.addr %s173, 8
          %s175 = scalar_lea.vmem %s3, %s174
          %s176 = smul.u32 16, %s13
        $region32: #{sgat_forward.3} parent=23 // pred_fallthru
          _
      $region24: #{sgat_forward.3} parent=5 // pred_fallthru
        _
      %p177 = scmp.le.s32.totalorder 1, %s13
      %p178 = scmp.lt.s32.totalorder %s13, 3
      %p179 = pnand %p177, %p178
      %p180 = pneg %p179
      // Predicated region
      $region33: #{sgat_forward.3} parent=5 // pred_check
        _
      $region34: #{sgat_forward.3} parent=5 // pred_check_branch
        %182 = sbr.rel (%p179) target = $region36
      $region35: #{sgat_forward.3} parent=5 // pred_region
        %s183 = ssub.s32 %s13, 1
        %s184 = smul.u32 16, %s18
        %p185 = scmp.lt.s32.totalorder %s184, 31
        %s186 = scalar_select %p185, %s184, 31
        %s187 = smul.addr %s186, 8
        %s188 = scalar_lea.vmem %s0, %s187
        %p189 = pneg %p39
        %p190 = pneg %p36
        %p191 = pneg %p60
        %p192 = pneg %p57
        %p193 = pneg %p81
        %p194 = pneg %p78
        %s195 = smul.u32 16, %s18
        %p196 = scmp.lt.s32.totalorder %s195, 31
        %s197 = scalar_select %p196, %s195, 31
        %s198 = smul.addr %s197, 4
        %s199 = smul.addr %s198, 8
        %s200 = scalar_lea.vmem %s3, %s199
        %p201 = pneg %p107
        %p202 = pneg %p104
        %p203 = pneg %p133
        %p204 = pneg %p130
        %s205 = sand.u32 %s120, 1
        %s206 = scalar_lea.sflag [#allocation3], %s205
        %s207 = sand.u32 %s120, 1
        %s208 = smul.addr %s207, 128
        %s209 = scalar_lea.vmem [#allocation2], %s208
        %s210 = smul.u32 16, %s18
        %p211 = scmp.lt.s32.totalorder %s210, 31
        %s212 = scalar_select %p211, %s210, 31
        %s213 = smul.addr %s212, 8
        %s214 = scalar_lea.vmem %s0, %s213
        %s215 = smul.u32 16, %s18
        %s216 = smul.u32 16, %s18
        %p217 = scmp.lt.s32.totalorder %s216, 31
        %s218 = scalar_select %p217, %s216, 31
        %s219 = smul.addr %s218, 4
        %s220 = smul.addr %s219, 8
        %s221 = scalar_lea.vmem %s3, %s220
        %s222 = smul.u32 16, %s18
        %s223 = smul.u32 16, %s18
        %v224 = vld [vmem:[%s214] sm:$0xff]
        %v225 = vld [vmem:[%s214 + $0x8] sm:$0xff]
        %v226 = vld [vmem:[%s214 + $0x10] sm:$0xff]
        %v227 = vld [vmem:[%s214 + $0x18] sm:$0xff]
        %v228 = vld [vmem:[%s214 + $0x20] sm:$0xff]
        %v229 = vld [vmem:[%s214 + $0x28] sm:$0xff]
        %v230 = vld [vmem:[%s214 + $0x30] sm:$0xff]
        %v231 = vld [vmem:[%s214 + $0x38] sm:$0xff]
        %v232 = vld [vmem:[%s214 + $0x40] sm:$0xff]
        %v233 = vld [vmem:[%s214 + $0x48] sm:$0xff]
        %v234 = vld [vmem:[%s214 + $0x50] sm:$0xff]
        %v235 = vld [vmem:[%s214 + $0x58] sm:$0xff]
        %v236 = vld [vmem:[%s214 + $0x60] sm:$0xff]
        %v237 = vld [vmem:[%s214 + $0x68] sm:$0xff]
        %v238 = vld [vmem:[%s214 + $0x70] sm:$0xff]
        %v239 = vld [vmem:[%s214 + $0x78] sm:$0xff]
        %v240 = vld [vmem:[%s1] sm:$0xf]
        %v241 = vld [vmem:[%s2] sm:$0xff]
        %v242 = vld [vmem:[%s2 + $0x8] sm:$0xff]
        %v243 = vld [vmem:[%s2 + $0x10] sm:$0xff]
        %v244 = vld [vmem:[%s2 + $0x18] sm:$0xff]
        %v245 = vld [vmem:[%s2 + $0x20] sm:$0xff]
        %v246 = vld [vmem:[%s2 + $0x28] sm:$0xff]
        %v247 = vld [vmem:[%s2 + $0x30] sm:$0xff]
        %v248 = vld [vmem:[%s2 + $0x38] sm:$0xff]
        %v249 = vld [vmem:[%s2 + $0x40] sm:$0xff]
        %v250 = vld [vmem:[%s2 + $0x48] sm:$0xff]
        %v251 = vld [vmem:[%s2 + $0x50] sm:$0xff]
        %v252 = vld [vmem:[%s2 + $0x58] sm:$0xff]
        %v253 = vld [vmem:[%s2 + $0x60] sm:$0xff]
        %v254 = vld [vmem:[%s2 + $0x68] sm:$0xff]
        %v255 = vld [vmem:[%s2 + $0x70] sm:$0xff]
        %v256 = vld [vmem:[%s2 + $0x78] sm:$0xff]
        %v257 = vld [vmem:[%s2 + $0x80] sm:$0xff]
        %v258 = vld [vmem:[%s2 + $0x88] sm:$0xff]
        %v259 = vld [vmem:[%s2 + $0x90] sm:$0xff]
        %v260 = vld [vmem:[%s2 + $0x98] sm:$0xff]
        %v261 = vld [vmem:[%s2 + $0xa0] sm:$0xff]
        %v262 = vld [vmem:[%s2 + $0xa8] sm:$0xff]
        %v263 = vld [vmem:[%s2 + $0xb0] sm:$0xff]
        %v264 = vld [vmem:[%s2 + $0xb8] sm:$0xff]
        %v265 = vld [vmem:[%s2 + $0xc0] sm:$0xff]
        %v266 = vld [vmem:[%s2 + $0xc8] sm:$0xff]
        %v267 = vld [vmem:[%s2 + $0xd0] sm:$0xff]
        %v268 = vld [vmem:[%s2 + $0xd8] sm:$0xff]
        %v269 = vld [vmem:[%s2 + $0xe0] sm:$0xff]
        %v270 = vld [vmem:[%s2 + $0xe8] sm:$0xff]
        %v271 = vld [vmem:[%s2 + $0xf0] sm:$0xff]
        %v272 = vld [vmem:[%s2 + $0xf8] sm:$0xff]
        %v273 = vld [vmem:[%s2 + $0x100] sm:$0xff]
        %v274 = vld [vmem:[%s2 + $0x108] sm:$0xff]
        %v275 = vld [vmem:[%s2 + $0x110] sm:$0xff]
        %v276 = vld [vmem:[%s2 + $0x118] sm:$0xff]
        %v277 = vld [vmem:[%s2 + $0x120] sm:$0xff]
        %v278 = vld [vmem:[%s2 + $0x128] sm:$0xff]
        %v279 = vld [vmem:[%s2 + $0x130] sm:$0xff]
        %v280 = vld [vmem:[%s2 + $0x138] sm:$0xff]
        %v281 = vld [vmem:[%s2 + $0x140] sm:$0xff]
        %v282 = vld [vmem:[%s2 + $0x148] sm:$0xff]
        %v283 = vld [vmem:[%s2 + $0x150] sm:$0xff]
        %v284 = vld [vmem:[%s2 + $0x158] sm:$0xff]
        %v285 = vld [vmem:[%s2 + $0x160] sm:$0xff]
        %v286 = vld [vmem:[%s2 + $0x168] sm:$0xff]
        %v287 = vld [vmem:[%s2 + $0x170] sm:$0xff]
        %v288 = vld [vmem:[%s2 + $0x178] sm:$0xff]
        %v289 = vld [vmem:[%s2 + $0x180] sm:$0xff]
        %v290 = vld [vmem:[%s2 + $0x188] sm:$0xff]
        %v291 = vld [vmem:[%s2 + $0x190] sm:$0xff]
        %v292 = vld [vmem:[%s2 + $0x198] sm:$0xff]
        %v293 = vld [vmem:[%s2 + $0x1a0] sm:$0xff]
        %v294 = vld [vmem:[%s2 + $0x1a8] sm:$0xff]
        %v295 = vld [vmem:[%s2 + $0x1b0] sm:$0xff]
        %v296 = vld [vmem:[%s2 + $0x1b8] sm:$0xff]
        %v297 = vld [vmem:[%s2 + $0x1c0] sm:$0xff]
        %v298 = vld [vmem:[%s2 + $0x1c8] sm:$0xff]
        %v299 = vld [vmem:[%s2 + $0x1d0] sm:$0xff]
        %v300 = vld [vmem:[%s2 + $0x1d8] sm:$0xff]
        %v301 = vld [vmem:[%s2 + $0x1e0] sm:$0xff]
        %v302 = vld [vmem:[%s2 + $0x1e8] sm:$0xff]
        %v303 = vld [vmem:[%s2 + $0x1f0] sm:$0xff]
        %v304 = vld [vmem:[%s2 + $0x1f8] sm:$0xff]
        %v305 = vld [vmem:[%s221] sm:$0xff]
        %v306 = vld [vmem:[%s221 + $0x8] sm:$0xff]
        %v307 = vld [vmem:[%s221 + $0x10] sm:$0xff]
        %v308 = vld [vmem:[%s221 + $0x18] sm:$0xff]
        %v309 = vld [vmem:[%s221 + $0x20] sm:$0xff]
        %v310 = vld [vmem:[%s221 + $0x28] sm:$0xff]
        %v311 = vld [vmem:[%s221 + $0x30] sm:$0xff]
        %v312 = vld [vmem:[%s221 + $0x38] sm:$0xff]
        %v313 = vld [vmem:[%s221 + $0x40] sm:$0xff]
        %v314 = vld [vmem:[%s221 + $0x48] sm:$0xff]
        %v315 = vld [vmem:[%s221 + $0x50] sm:$0xff]
        %v316 = vld [vmem:[%s221 + $0x58] sm:$0xff]
        %v317 = vld [vmem:[%s221 + $0x60] sm:$0xff]
        %v318 = vld [vmem:[%s221 + $0x68] sm:$0xff]
        %v319 = vld [vmem:[%s221 + $0x70] sm:$0xff]
        %v320 = vld [vmem:[%s221 + $0x78] sm:$0xff]
        %v321 = vld [vmem:[%s221 + $0x80] sm:$0xff]
        %v322 = vld [vmem:[%s221 + $0x88] sm:$0xff]
        %v323 = vld [vmem:[%s221 + $0x90] sm:$0xff]
        %v324 = vld [vmem:[%s221 + $0x98] sm:$0xff]
        %v325 = vld [vmem:[%s221 + $0xa0] sm:$0xff]
        %v326 = vld [vmem:[%s221 + $0xa8] sm:$0xff]
        %v327 = vld [vmem:[%s221 + $0xb0] sm:$0xff]
        %v328 = vld [vmem:[%s221 + $0xb8] sm:$0xff]
        %v329 = vld [vmem:[%s221 + $0xc0] sm:$0xff]
        %v330 = vld [vmem:[%s221 + $0xc8] sm:$0xff]
        %v331 = vld [vmem:[%s221 + $0xd0] sm:$0xff]
        %v332 = vld [vmem:[%s221 + $0xd8] sm:$0xff]
        %v333 = vld [vmem:[%s221 + $0xe0] sm:$0xff]
        %v334 = vld [vmem:[%s221 + $0xe8] sm:$0xff]
        %v335 = vld [vmem:[%s221 + $0xf0] sm:$0xff]
        %v336 = vld [vmem:[%s221 + $0xf8] sm:$0xff]
        %v337 = vld [vmem:[%s221 + $0x100] sm:$0xff]
        %v338 = vld [vmem:[%s221 + $0x108] sm:$0xff]
        %v339 = vld [vmem:[%s221 + $0x110] sm:$0xff]
        %v340 = vld [vmem:[%s221 + $0x118] sm:$0xff]
        %v341 = vld [vmem:[%s221 + $0x120] sm:$0xff]
        %v342 = vld [vmem:[%s221 + $0x128] sm:$0xff]
        %v343 = vld [vmem:[%s221 + $0x130] sm:$0xff]
        %v344 = vld [vmem:[%s221 + $0x138] sm:$0xff]
        %v345 = vld [vmem:[%s221 + $0x140] sm:$0xff]
        %v346 = vld [vmem:[%s221 + $0x148] sm:$0xff]
        %v347 = vld [vmem:[%s221 + $0x150] sm:$0xff]
        %v348 = vld [vmem:[%s221 + $0x158] sm:$0xff]
        %v349 = vld [vmem:[%s221 + $0x160] sm:$0xff]
        %v350 = vld [vmem:[%s221 + $0x168] sm:$0xff]
        %v351 = vld [vmem:[%s221 + $0x170] sm:$0xff]
        %v352 = vld [vmem:[%s221 + $0x178] sm:$0xff]
        %v353 = vld [vmem:[%s221 + $0x180] sm:$0xff]
        %v354 = vld [vmem:[%s221 + $0x188] sm:$0xff]
        %v355 = vld [vmem:[%s221 + $0x190] sm:$0xff]
        %v356 = vld [vmem:[%s221 + $0x198] sm:$0xff]
        %v357 = vld [vmem:[%s221 + $0x1a0] sm:$0xff]
        %v358 = vld [vmem:[%s221 + $0x1a8] sm:$0xff]
        %v359 = vld [vmem:[%s221 + $0x1b0] sm:$0xff]
        %v360 = vld [vmem:[%s221 + $0x1b8] sm:$0xff]
        %v361 = vld [vmem:[%s221 + $0x1c0] sm:$0xff]
        %v362 = vld [vmem:[%s221 + $0x1c8] sm:$0xff]
        %v363 = vld [vmem:[%s221 + $0x1d0] sm:$0xff]
        %v364 = vld [vmem:[%s221 + $0x1d8] sm:$0xff]
        %v365 = vld [vmem:[%s221 + $0x1e0] sm:$0xff]
        %v366 = vld [vmem:[%s221 + $0x1e8] sm:$0xff]
        %v367 = vld [vmem:[%s221 + $0x1f0] sm:$0xff]
        %v368 = vld [vmem:[%s221 + $0x1f8] sm:$0xff]
        %370 = vset.pattern.permute.xlu0 0
        %371 = vperm.xlu0 %370, %v224
        %v372 = vpop.permute.xlu0 %371
        %375 = vset.pattern.permute.xlu0 0
        %376 = vperm.xlu0 %375, %v225
        %v377 = vpop.permute.xlu0 %376
        %380 = vset.pattern.permute.xlu0 0
        %381 = vperm.xlu0 %380, %v226
        %v382 = vpop.permute.xlu0 %381
        %385 = vset.pattern.permute.xlu0 0
        %386 = vperm.xlu0 %385, %v227
        %v387 = vpop.permute.xlu0 %386
        %390 = vset.pattern.permute.xlu0 0
        %391 = vperm.xlu0 %390, %v228
        %v392 = vpop.permute.xlu0 %391
        %395 = vset.pattern.permute.xlu0 0
        %396 = vperm.xlu0 %395, %v229
        %v397 = vpop.permute.xlu0 %396
        %400 = vset.pattern.permute.xlu0 0
        %401 = vperm.xlu0 %400, %v230
        %v402 = vpop.permute.xlu0 %401
        %405 = vset.pattern.permute.xlu0 0
        %406 = vperm.xlu0 %405, %v231
        %v407 = vpop.permute.xlu0 %406
        %410 = vset.pattern.permute.xlu0 0
        %411 = vperm.xlu0 %410, %v232
        %v412 = vpop.permute.xlu0 %411
        %415 = vset.pattern.permute.xlu0 0
        %416 = vperm.xlu0 %415, %v233
        %v417 = vpop.permute.xlu0 %416
        %420 = vset.pattern.permute.xlu0 0
        %421 = vperm.xlu0 %420, %v234
        %v422 = vpop.permute.xlu0 %421
        %425 = vset.pattern.permute.xlu0 0
        %426 = vperm.xlu0 %425, %v235
        %v427 = vpop.permute.xlu0 %426
        %430 = vset.pattern.permute.xlu0 0
        %431 = vperm.xlu0 %430, %v236
        %v432 = vpop.permute.xlu0 %431
        %435 = vset.pattern.permute.xlu0 0
        %436 = vperm.xlu0 %435, %v237
        %v437 = vpop.permute.xlu0 %436
        %440 = vset.pattern.permute.xlu0 0
        %441 = vperm.xlu0 %440, %v238
        %v442 = vpop.permute.xlu0 %441
        %445 = vset.pattern.permute.xlu0 0
        %446 = vperm.xlu0 %445, %v239
        %v447 = vpop.permute.xlu0 %446
        %v450 = vperm.slane %v240, 0
        %v451 = vperm.slane %v240, 1
        %v452 = vperm.slane %v240, 2
        %v453 = vperm.slane %v240, 3
        %v458 = vadd.f32 %v372, %v450
        %v459 = vadd.f32 %v372, %v451
        %v460 = vadd.f32 %v372, %v452
        %v461 = vadd.f32 %v372, %v453
        %v462 = vadd.f32 %v377, %v450
        %v463 = vadd.f32 %v377, %v451
        %v464 = vadd.f32 %v377, %v452
        %v465 = vadd.f32 %v377, %v453
        %v466 = vadd.f32 %v382, %v450
        %v467 = vadd.f32 %v382, %v451
        %v468 = vadd.f32 %v382, %v452
        %v469 = vadd.f32 %v382, %v453
        %v470 = vadd.f32 %v387, %v450
        %v471 = vadd.f32 %v387, %v451
        %v472 = vadd.f32 %v387, %v452
        %v473 = vadd.f32 %v387, %v453
        %v474 = vadd.f32 %v392, %v450
        %v475 = vadd.f32 %v392, %v451
        %v476 = vadd.f32 %v392, %v452
        %v477 = vadd.f32 %v392, %v453
        %v478 = vadd.f32 %v397, %v450
        %v479 = vadd.f32 %v397, %v451
        %v480 = vadd.f32 %v397, %v452
        %v481 = vadd.f32 %v397, %v453
        %v482 = vadd.f32 %v402, %v450
        %v483 = vadd.f32 %v402, %v451
        %v484 = vadd.f32 %v402, %v452
        %v485 = vadd.f32 %v402, %v453
        %v486 = vadd.f32 %v407, %v450
        %v487 = vadd.f32 %v407, %v451
        %v488 = vadd.f32 %v407, %v452
        %v489 = vadd.f32 %v407, %v453
        %v490 = vadd.f32 %v412, %v450
        %v491 = vadd.f32 %v412, %v451
        %v492 = vadd.f32 %v412, %v452
        %v493 = vadd.f32 %v412, %v453
        %v494 = vadd.f32 %v417, %v450
        %v495 = vadd.f32 %v417, %v451
        %v496 = vadd.f32 %v417, %v452
        %v497 = vadd.f32 %v417, %v453
        %v498 = vadd.f32 %v422, %v450
        %v499 = vadd.f32 %v422, %v451
        %v500 = vadd.f32 %v422, %v452
        %v501 = vadd.f32 %v422, %v453
        %v502 = vadd.f32 %v427, %v450
        %v503 = vadd.f32 %v427, %v451
        %v504 = vadd.f32 %v427, %v452
        %v505 = vadd.f32 %v427, %v453
        %v506 = vadd.f32 %v432, %v450
        %v507 = vadd.f32 %v432, %v451
        %v508 = vadd.f32 %v432, %v452
        %v509 = vadd.f32 %v432, %v453
        %v510 = vadd.f32 %v437, %v450
        %v511 = vadd.f32 %v437, %v451
        %v512 = vadd.f32 %v437, %v452
        %v513 = vadd.f32 %v437, %v453
        %v514 = vadd.f32 %v442, %v450
        %v515 = vadd.f32 %v442, %v451
        %v516 = vadd.f32 %v442, %v452
        %v517 = vadd.f32 %v442, %v453
        %v518 = vadd.f32 %v447, %v450
        %v519 = vadd.f32 %v447, %v451
        %v520 = vadd.f32 %v447, %v452
        %v521 = vadd.f32 %v447, %v453
        %vm522 = vcmp.ge.f32.partialorder %v458, 0.0
        %vm523 = vcmp.ge.f32.partialorder %v459, 0.0
        %vm524 = vcmp.ge.f32.partialorder %v460, 0.0
        %vm525 = vcmp.ge.f32.partialorder %v461, 0.0
        %vm526 = vcmp.ge.f32.partialorder %v462, 0.0
        %vm527 = vcmp.ge.f32.partialorder %v463, 0.0
        %vm528 = vcmp.ge.f32.partialorder %v464, 0.0
        %vm529 = vcmp.ge.f32.partialorder %v465, 0.0
        %vm530 = vcmp.ge.f32.partialorder %v466, 0.0
        %vm531 = vcmp.ge.f32.partialorder %v467, 0.0
        %vm532 = vcmp.ge.f32.partialorder %v468, 0.0
        %vm533 = vcmp.ge.f32.partialorder %v469, 0.0
        %vm534 = vcmp.ge.f32.partialorder %v470, 0.0
        %vm535 = vcmp.ge.f32.partialorder %v471, 0.0
        %vm536 = vcmp.ge.f32.partialorder %v472, 0.0
        %vm537 = vcmp.ge.f32.partialorder %v473, 0.0
        %vm538 = vcmp.ge.f32.partialorder %v474, 0.0
        %vm539 = vcmp.ge.f32.partialorder %v475, 0.0
        %vm540 = vcmp.ge.f32.partialorder %v476, 0.0
        %vm541 = vcmp.ge.f32.partialorder %v477, 0.0
        %vm542 = vcmp.ge.f32.partialorder %v478, 0.0
        %vm543 = vcmp.ge.f32.partialorder %v479, 0.0
        %vm544 = vcmp.ge.f32.partialorder %v480, 0.0
        %vm545 = vcmp.ge.f32.partialorder %v481, 0.0
        %vm546 = vcmp.ge.f32.partialorder %v482, 0.0
        %vm547 = vcmp.ge.f32.partialorder %v483, 0.0
        %vm548 = vcmp.ge.f32.partialorder %v484, 0.0
        %vm549 = vcmp.ge.f32.partialorder %v485, 0.0
        %vm550 = vcmp.ge.f32.partialorder %v486, 0.0
        %vm551 = vcmp.ge.f32.partialorder %v487, 0.0
        %vm552 = vcmp.ge.f32.partialorder %v488, 0.0
        %vm553 = vcmp.ge.f32.partialorder %v489, 0.0
        %vm554 = vcmp.ge.f32.partialorder %v490, 0.0
        %vm555 = vcmp.ge.f32.partialorder %v491, 0.0
        %vm556 = vcmp.ge.f32.partialorder %v492, 0.0
        %vm557 = vcmp.ge.f32.partialorder %v493, 0.0
        %vm558 = vcmp.ge.f32.partialorder %v494, 0.0
        %vm559 = vcmp.ge.f32.partialorder %v495, 0.0
        %vm560 = vcmp.ge.f32.partialorder %v496, 0.0
        %vm561 = vcmp.ge.f32.partialorder %v497, 0.0
        %vm562 = vcmp.ge.f32.partialorder %v498, 0.0
        %vm563 = vcmp.ge.f32.partialorder %v499, 0.0
        %vm564 = vcmp.ge.f32.partialorder %v500, 0.0
        %vm565 = vcmp.ge.f32.partialorder %v501, 0.0
        %vm566 = vcmp.ge.f32.partialorder %v502, 0.0
        %vm567 = vcmp.ge.f32.partialorder %v503, 0.0
        %vm568 = vcmp.ge.f32.partialorder %v504, 0.0
        %vm569 = vcmp.ge.f32.partialorder %v505, 0.0
        %vm570 = vcmp.ge.f32.partialorder %v506, 0.0
        %vm571 = vcmp.ge.f32.partialorder %v507, 0.0
        %vm572 = vcmp.ge.f32.partialorder %v508, 0.0
        %vm573 = vcmp.ge.f32.partialorder %v509, 0.0
        %vm574 = vcmp.ge.f32.partialorder %v510, 0.0
        %vm575 = vcmp.ge.f32.partialorder %v511, 0.0
        %vm576 = vcmp.ge.f32.partialorder %v512, 0.0
        %vm577 = vcmp.ge.f32.partialorder %v513, 0.0
        %vm578 = vcmp.ge.f32.partialorder %v514, 0.0
        %vm579 = vcmp.ge.f32.partialorder %v515, 0.0
        %vm580 = vcmp.ge.f32.partialorder %v516, 0.0
        %vm581 = vcmp.ge.f32.partialorder %v517, 0.0
        %vm582 = vcmp.ge.f32.partialorder %v518, 0.0
        %vm583 = vcmp.ge.f32.partialorder %v519, 0.0
        %vm584 = vcmp.ge.f32.partialorder %v520, 0.0
        %vm585 = vcmp.ge.f32.partialorder %v521, 0.0
        %v586 = vmul.f32 %v458, 0.01
        %v587 = vmul.f32 %v459, 0.01
        %v588 = vmul.f32 %v460, 0.01
        %v589 = vmul.f32 %v461, 0.01
        %v590 = vmul.f32 %v462, 0.01
        %v591 = vmul.f32 %v463, 0.01
        %v592 = vmul.f32 %v464, 0.01
        %v593 = vmul.f32 %v465, 0.01
        %v594 = vmul.f32 %v466, 0.01
        %v595 = vmul.f32 %v467, 0.01
        %v596 = vmul.f32 %v468, 0.01
        %v597 = vmul.f32 %v469, 0.01
        %v598 = vmul.f32 %v470, 0.01
        %v599 = vmul.f32 %v471, 0.01
        %v600 = vmul.f32 %v472, 0.01
        %v601 = vmul.f32 %v473, 0.01
        %v602 = vmul.f32 %v474, 0.01
        %v603 = vmul.f32 %v475, 0.01
        %v604 = vmul.f32 %v476, 0.01
        %v605 = vmul.f32 %v477, 0.01
        %v606 = vmul.f32 %v478, 0.01
        %v607 = vmul.f32 %v479, 0.01
        %v608 = vmul.f32 %v480, 0.01
        %v609 = vmul.f32 %v481, 0.01
        %v610 = vmul.f32 %v482, 0.01
        %v611 = vmul.f32 %v483, 0.01
        %v612 = vmul.f32 %v484, 0.01
        %v613 = vmul.f32 %v485, 0.01
        %v614 = vmul.f32 %v486, 0.01
        %v615 = vmul.f32 %v487, 0.01
        %v616 = vmul.f32 %v488, 0.01
        %v617 = vmul.f32 %v489, 0.01
        %v618 = vmul.f32 %v490, 0.01
        %v619 = vmul.f32 %v491, 0.01
        %v620 = vmul.f32 %v492, 0.01
        %v621 = vmul.f32 %v493, 0.01
        %v622 = vmul.f32 %v494, 0.01
        %v623 = vmul.f32 %v495, 0.01
        %v624 = vmul.f32 %v496, 0.01
        %v625 = vmul.f32 %v497, 0.01
        %v626 = vmul.f32 %v498, 0.01
        %v627 = vmul.f32 %v499, 0.01
        %v628 = vmul.f32 %v500, 0.01
        %v629 = vmul.f32 %v501, 0.01
        %v630 = vmul.f32 %v502, 0.01
        %v631 = vmul.f32 %v503, 0.01
        %v632 = vmul.f32 %v504, 0.01
        %v633 = vmul.f32 %v505, 0.01
        %v634 = vmul.f32 %v506, 0.01
        %v635 = vmul.f32 %v507, 0.01
        %v636 = vmul.f32 %v508, 0.01
        %v637 = vmul.f32 %v509, 0.01
        %v638 = vmul.f32 %v510, 0.01
        %v639 = vmul.f32 %v511, 0.01
        %v640 = vmul.f32 %v512, 0.01
        %v641 = vmul.f32 %v513, 0.01
        %v642 = vmul.f32 %v514, 0.01
        %v643 = vmul.f32 %v515, 0.01
        %v644 = vmul.f32 %v516, 0.01
        %v645 = vmul.f32 %v517, 0.01
        %v646 = vmul.f32 %v518, 0.01
        %v647 = vmul.f32 %v519, 0.01
        %v648 = vmul.f32 %v520, 0.01
        %v649 = vmul.f32 %v521, 0.01
        %v650 = vsel %vm522, %v458, %v586
        %v651 = vsel %vm523, %v459, %v587
        %v652 = vsel %vm524, %v460, %v588
        %v653 = vsel %vm525, %v461, %v589
        %v654 = vsel %vm526, %v462, %v590
        %v655 = vsel %vm527, %v463, %v591
        %v656 = vsel %vm528, %v464, %v592
        %v657 = vsel %vm529, %v465, %v593
        %v658 = vsel %vm530, %v466, %v594
        %v659 = vsel %vm531, %v467, %v595
        %v660 = vsel %vm532, %v468, %v596
        %v661 = vsel %vm533, %v469, %v597
        %v662 = vsel %vm534, %v470, %v598
        %v663 = vsel %vm535, %v471, %v599
        %v664 = vsel %vm536, %v472, %v600
        %v665 = vsel %vm537, %v473, %v601
        %v666 = vsel %vm538, %v474, %v602
        %v667 = vsel %vm539, %v475, %v603
        %v668 = vsel %vm540, %v476, %v604
        %v669 = vsel %vm541, %v477, %v605
        %v670 = vsel %vm542, %v478, %v606
        %v671 = vsel %vm543, %v479, %v607
        %v672 = vsel %vm544, %v480, %v608
        %v673 = vsel %vm545, %v481, %v609
        %v674 = vsel %vm546, %v482, %v610
        %v675 = vsel %vm547, %v483, %v611
        %v676 = vsel %vm548, %v484, %v612
        %v677 = vsel %vm549, %v485, %v613
        %v678 = vsel %vm550, %v486, %v614
        %v679 = vsel %vm551, %v487, %v615
        %v680 = vsel %vm552, %v488, %v616
        %v681 = vsel %vm553, %v489, %v617
        %v682 = vsel %vm554, %v490, %v618
        %v683 = vsel %vm555, %v491, %v619
        %v684 = vsel %vm556, %v492, %v620
        %v685 = vsel %vm557, %v493, %v621
        %v686 = vsel %vm558, %v494, %v622
        %v687 = vsel %vm559, %v495, %v623
        %v688 = vsel %vm560, %v496, %v624
        %v689 = vsel %vm561, %v497, %v625
        %v690 = vsel %vm562, %v498, %v626
        %v691 = vsel %vm563, %v499, %v627
        %v692 = vsel %vm564, %v500, %v628
        %v693 = vsel %vm565, %v501, %v629
        %v694 = vsel %vm566, %v502, %v630
        %v695 = vsel %vm567, %v503, %v631
        %v696 = vsel %vm568, %v504, %v632
        %v697 = vsel %vm569, %v505, %v633
        %v698 = vsel %vm570, %v506, %v634
        %v699 = vsel %vm571, %v507, %v635
        %v700 = vsel %vm572, %v508, %v636
        %v701 = vsel %vm573, %v509, %v637
        %v702 = vsel %vm574, %v510, %v638
        %v703 = vsel %vm575, %v511, %v639
        %v704 = vsel %vm576, %v512, %v640
        %v705 = vsel %vm577, %v513, %v641
        %v706 = vsel %vm578, %v514, %v642
        %v707 = vsel %vm579, %v515, %v643
        %v708 = vsel %vm580, %v516, %v644
        %v709 = vsel %vm581, %v517, %v645
        %v710 = vsel %vm582, %v518, %v646
        %v711 = vsel %vm583, %v519, %v647
        %v712 = vsel %vm584, %v520, %v648
        %v713 = vsel %vm585, %v521, %v649
        %vm714 = vcmp.gt.f32.partialorder %v305, 0.0
        %vm715 = vcmp.gt.f32.partialorder %v306, 0.0
        %vm716 = vcmp.gt.f32.partialorder %v307, 0.0
        %vm717 = vcmp.gt.f32.partialorder %v308, 0.0
        %vm718 = vcmp.gt.f32.partialorder %v309, 0.0
        %vm719 = vcmp.gt.f32.partialorder %v310, 0.0
        %vm720 = vcmp.gt.f32.partialorder %v311, 0.0
        %vm721 = vcmp.gt.f32.partialorder %v312, 0.0
        %vm722 = vcmp.gt.f32.partialorder %v313, 0.0
        %vm723 = vcmp.gt.f32.partialorder %v314, 0.0
        %vm724 = vcmp.gt.f32.partialorder %v315, 0.0
        %vm725 = vcmp.gt.f32.partialorder %v316, 0.0
        %vm726 = vcmp.gt.f32.partialorder %v317, 0.0
        %vm727 = vcmp.gt.f32.partialorder %v318, 0.0
        %vm728 = vcmp.gt.f32.partialorder %v319, 0.0
        %vm729 = vcmp.gt.f32.partialorder %v320, 0.0
        %vm730 = vcmp.gt.f32.partialorder %v321, 0.0
        %vm731 = vcmp.gt.f32.partialorder %v322, 0.0
        %vm732 = vcmp.gt.f32.partialorder %v323, 0.0
        %vm733 = vcmp.gt.f32.partialorder %v324, 0.0
        %vm734 = vcmp.gt.f32.partialorder %v325, 0.0
        %vm735 = vcmp.gt.f32.partialorder %v326, 0.0
        %vm736 = vcmp.gt.f32.partialorder %v327, 0.0
        %vm737 = vcmp.gt.f32.partialorder %v328, 0.0
        %vm738 = vcmp.gt.f32.partialorder %v329, 0.0
        %vm739 = vcmp.gt.f32.partialorder %v330, 0.0
        %vm740 = vcmp.gt.f32.partialorder %v331, 0.0
        %vm741 = vcmp.gt.f32.partialorder %v332, 0.0
        %vm742 = vcmp.gt.f32.partialorder %v333, 0.0
        %vm743 = vcmp.gt.f32.partialorder %v334, 0.0
        %vm744 = vcmp.gt.f32.partialorder %v335, 0.0
        %vm745 = vcmp.gt.f32.partialorder %v336, 0.0
        %vm746 = vcmp.gt.f32.partialorder %v337, 0.0
        %vm747 = vcmp.gt.f32.partialorder %v338, 0.0
        %vm748 = vcmp.gt.f32.partialorder %v339, 0.0
        %vm749 = vcmp.gt.f32.partialorder %v340, 0.0
        %vm750 = vcmp.gt.f32.partialorder %v341, 0.0
        %vm751 = vcmp.gt.f32.partialorder %v342, 0.0
        %vm752 = vcmp.gt.f32.partialorder %v343, 0.0
        %vm753 = vcmp.gt.f32.partialorder %v344, 0.0
        %vm754 = vcmp.gt.f32.partialorder %v345, 0.0
        %vm755 = vcmp.gt.f32.partialorder %v346, 0.0
        %vm756 = vcmp.gt.f32.partialorder %v347, 0.0
        %vm757 = vcmp.gt.f32.partialorder %v348, 0.0
        %vm758 = vcmp.gt.f32.partialorder %v349, 0.0
        %vm759 = vcmp.gt.f32.partialorder %v350, 0.0
        %vm760 = vcmp.gt.f32.partialorder %v351, 0.0
        %vm761 = vcmp.gt.f32.partialorder %v352, 0.0
        %vm762 = vcmp.gt.f32.partialorder %v353, 0.0
        %vm763 = vcmp.gt.f32.partialorder %v354, 0.0
        %vm764 = vcmp.gt.f32.partialorder %v355, 0.0
        %vm765 = vcmp.gt.f32.partialorder %v356, 0.0
        %vm766 = vcmp.gt.f32.partialorder %v357, 0.0
        %vm767 = vcmp.gt.f32.partialorder %v358, 0.0
        %vm768 = vcmp.gt.f32.partialorder %v359, 0.0
        %vm769 = vcmp.gt.f32.partialorder %v360, 0.0
        %vm770 = vcmp.gt.f32.partialorder %v361, 0.0
        %vm771 = vcmp.gt.f32.partialorder %v362, 0.0
        %vm772 = vcmp.gt.f32.partialorder %v363, 0.0
        %vm773 = vcmp.gt.f32.partialorder %v364, 0.0
        %vm774 = vcmp.gt.f32.partialorder %v365, 0.0
        %vm775 = vcmp.gt.f32.partialorder %v366, 0.0
        %vm776 = vcmp.gt.f32.partialorder %v367, 0.0
        %vm777 = vcmp.gt.f32.partialorder %v368, 0.0
        %v778 = vsel %vm714, %v650, -1e+30
        %v779 = vsel %vm715, %v651, -1e+30
        %v780 = vsel %vm716, %v652, -1e+30
        %v781 = vsel %vm717, %v653, -1e+30
        %v782 = vsel %vm718, %v654, -1e+30
        %v783 = vsel %vm719, %v655, -1e+30
        %v784 = vsel %vm720, %v656, -1e+30
        %v785 = vsel %vm721, %v657, -1e+30
        %v786 = vsel %vm722, %v658, -1e+30
        %v787 = vsel %vm723, %v659, -1e+30
        %v788 = vsel %vm724, %v660, -1e+30
        %v789 = vsel %vm725, %v661, -1e+30
        %v790 = vsel %vm726, %v662, -1e+30
        %v791 = vsel %vm727, %v663, -1e+30
        %v792 = vsel %vm728, %v664, -1e+30
        %v793 = vsel %vm729, %v665, -1e+30
        %v794 = vsel %vm730, %v666, -1e+30
        %v795 = vsel %vm731, %v667, -1e+30
        %v796 = vsel %vm732, %v668, -1e+30
        %v797 = vsel %vm733, %v669, -1e+30
        %v798 = vsel %vm734, %v670, -1e+30
        %v799 = vsel %vm735, %v671, -1e+30
        %v800 = vsel %vm736, %v672, -1e+30
        %v801 = vsel %vm737, %v673, -1e+30
        %v802 = vsel %vm738, %v674, -1e+30
        %v803 = vsel %vm739, %v675, -1e+30
        %v804 = vsel %vm740, %v676, -1e+30
        %v805 = vsel %vm741, %v677, -1e+30
        %v806 = vsel %vm742, %v678, -1e+30
        %v807 = vsel %vm743, %v679, -1e+30
        %v808 = vsel %vm744, %v680, -1e+30
        %v809 = vsel %vm745, %v681, -1e+30
        %v810 = vsel %vm746, %v682, -1e+30
        %v811 = vsel %vm747, %v683, -1e+30
        %v812 = vsel %vm748, %v684, -1e+30
        %v813 = vsel %vm749, %v685, -1e+30
        %v814 = vsel %vm750, %v686, -1e+30
        %v815 = vsel %vm751, %v687, -1e+30
        %v816 = vsel %vm752, %v688, -1e+30
        %v817 = vsel %vm753, %v689, -1e+30
        %v818 = vsel %vm754, %v690, -1e+30
        %v819 = vsel %vm755, %v691, -1e+30
        %v820 = vsel %vm756, %v692, -1e+30
        %v821 = vsel %vm757, %v693, -1e+30
        %v822 = vsel %vm758, %v694, -1e+30
        %v823 = vsel %vm759, %v695, -1e+30
        %v824 = vsel %vm760, %v696, -1e+30
        %v825 = vsel %vm761, %v697, -1e+30
        %v826 = vsel %vm762, %v698, -1e+30
        %v827 = vsel %vm763, %v699, -1e+30
        %v828 = vsel %vm764, %v700, -1e+30
        %v829 = vsel %vm765, %v701, -1e+30
        %v830 = vsel %vm766, %v702, -1e+30
        %v831 = vsel %vm767, %v703, -1e+30
        %v832 = vsel %vm768, %v704, -1e+30
        %v833 = vsel %vm769, %v705, -1e+30
        %v834 = vsel %vm770, %v706, -1e+30
        %v835 = vsel %vm771, %v707, -1e+30
        %v836 = vsel %vm772, %v708, -1e+30
        %v837 = vsel %vm773, %v709, -1e+30
        %v838 = vsel %vm774, %v710, -1e+30
        %v839 = vsel %vm775, %v711, -1e+30
        %v840 = vsel %vm776, %v712, -1e+30
        %v841 = vsel %vm777, %v713, -1e+30
        %v842 = vmax.f32 %v778, %v779
        %v843 = vmax.f32 %v842, %v780
        %v844 = vmax.f32 %v843, %v781
        %845 = vmax.xlane.f32.xlu0 %v844
        %v846 = vpop.xlane.xlu0 %845
        %v847 = vmax.f32 %v782, %v783
        %v848 = vmax.f32 %v847, %v784
        %v849 = vmax.f32 %v848, %v785
        %850 = vmax.xlane.f32.xlu0 %v849
        %v851 = vpop.xlane.xlu0 %850
        %v852 = vmax.f32 %v786, %v787
        %v853 = vmax.f32 %v852, %v788
        %v854 = vmax.f32 %v853, %v789
        %855 = vmax.xlane.f32.xlu0 %v854
        %v856 = vpop.xlane.xlu0 %855
        %v857 = vmax.f32 %v790, %v791
        %v858 = vmax.f32 %v857, %v792
        %v859 = vmax.f32 %v858, %v793
        %860 = vmax.xlane.f32.xlu0 %v859
        %v861 = vpop.xlane.xlu0 %860
        %v862 = vmax.f32 %v794, %v795
        %v863 = vmax.f32 %v862, %v796
        %v864 = vmax.f32 %v863, %v797
        %865 = vmax.xlane.f32.xlu0 %v864
        %v866 = vpop.xlane.xlu0 %865
        %v867 = vmax.f32 %v798, %v799
        %v868 = vmax.f32 %v867, %v800
        %v869 = vmax.f32 %v868, %v801
        %870 = vmax.xlane.f32.xlu0 %v869
        %v871 = vpop.xlane.xlu0 %870
        %v872 = vmax.f32 %v802, %v803
        %v873 = vmax.f32 %v872, %v804
        %v874 = vmax.f32 %v873, %v805
        %875 = vmax.xlane.f32.xlu0 %v874
        %v876 = vpop.xlane.xlu0 %875
        %v877 = vmax.f32 %v806, %v807
        %v878 = vmax.f32 %v877, %v808
        %v879 = vmax.f32 %v878, %v809
        %880 = vmax.xlane.f32.xlu0 %v879
        %v881 = vpop.xlane.xlu0 %880
        %v882 = vmax.f32 %v810, %v811
        %v883 = vmax.f32 %v882, %v812
        %v884 = vmax.f32 %v883, %v813
        %885 = vmax.xlane.f32.xlu0 %v884
        %v886 = vpop.xlane.xlu0 %885
        %v887 = vmax.f32 %v814, %v815
        %v888 = vmax.f32 %v887, %v816
        %v889 = vmax.f32 %v888, %v817
        %890 = vmax.xlane.f32.xlu0 %v889
        %v891 = vpop.xlane.xlu0 %890
        %v892 = vmax.f32 %v818, %v819
        %v893 = vmax.f32 %v892, %v820
        %v894 = vmax.f32 %v893, %v821
        %895 = vmax.xlane.f32.xlu0 %v894
        %v896 = vpop.xlane.xlu0 %895
        %v897 = vmax.f32 %v822, %v823
        %v898 = vmax.f32 %v897, %v824
        %v899 = vmax.f32 %v898, %v825
        %900 = vmax.xlane.f32.xlu0 %v899
        %v901 = vpop.xlane.xlu0 %900
        %v902 = vmax.f32 %v826, %v827
        %v903 = vmax.f32 %v902, %v828
        %v904 = vmax.f32 %v903, %v829
        %905 = vmax.xlane.f32.xlu0 %v904
        %v906 = vpop.xlane.xlu0 %905
        %v907 = vmax.f32 %v830, %v831
        %v908 = vmax.f32 %v907, %v832
        %v909 = vmax.f32 %v908, %v833
        %910 = vmax.xlane.f32.xlu0 %v909
        %v911 = vpop.xlane.xlu0 %910
        %v912 = vmax.f32 %v834, %v835
        %v913 = vmax.f32 %v912, %v836
        %v914 = vmax.f32 %v913, %v837
        %915 = vmax.xlane.f32.xlu0 %v914
        %v916 = vpop.xlane.xlu0 %915
        %v917 = vmax.f32 %v838, %v839
        %v918 = vmax.f32 %v917, %v840
        %v919 = vmax.f32 %v918, %v841
        %920 = vmax.xlane.f32.xlu0 %v919
        %v921 = vpop.xlane.xlu0 %920
        %v922 = vsub.f32 %v778, %v846
        %v923 = vsub.f32 %v779, %v846
        %v924 = vsub.f32 %v780, %v846
        %v925 = vsub.f32 %v781, %v846
        %v926 = vsub.f32 %v782, %v851
        %v927 = vsub.f32 %v783, %v851
        %v928 = vsub.f32 %v784, %v851
        %v929 = vsub.f32 %v785, %v851
        %v930 = vsub.f32 %v786, %v856
        %v931 = vsub.f32 %v787, %v856
        %v932 = vsub.f32 %v788, %v856
        %v933 = vsub.f32 %v789, %v856
        %v934 = vsub.f32 %v790, %v861
        %v935 = vsub.f32 %v791, %v861
        %v936 = vsub.f32 %v792, %v861
        %v937 = vsub.f32 %v793, %v861
        %v938 = vsub.f32 %v794, %v866
        %v939 = vsub.f32 %v795, %v866
        %v940 = vsub.f32 %v796, %v866
        %v941 = vsub.f32 %v797, %v866
        %v942 = vsub.f32 %v798, %v871
        %v943 = vsub.f32 %v799, %v871
        %v944 = vsub.f32 %v800, %v871
        %v945 = vsub.f32 %v801, %v871
        %v946 = vsub.f32 %v802, %v876
        %v947 = vsub.f32 %v803, %v876
        %v948 = vsub.f32 %v804, %v876
        %v949 = vsub.f32 %v805, %v876
        %v950 = vsub.f32 %v806, %v881
        %v951 = vsub.f32 %v807, %v881
        %v952 = vsub.f32 %v808, %v881
        %v953 = vsub.f32 %v809, %v881
        %v954 = vsub.f32 %v810, %v886
        %v955 = vsub.f32 %v811, %v886
        %v956 = vsub.f32 %v812, %v886
        %v957 = vsub.f32 %v813, %v886
        %v958 = vsub.f32 %v814, %v891
        %v959 = vsub.f32 %v815, %v891
        %v960 = vsub.f32 %v816, %v891
        %v961 = vsub.f32 %v817, %v891
        %v962 = vsub.f32 %v818, %v896
        %v963 = vsub.f32 %v819, %v896
        %v964 = vsub.f32 %v820, %v896
        %v965 = vsub.f32 %v821, %v896
        %v966 = vsub.f32 %v822, %v901
        %v967 = vsub.f32 %v823, %v901
        %v968 = vsub.f32 %v824, %v901
        %v969 = vsub.f32 %v825, %v901
        %v970 = vsub.f32 %v826, %v906
        %v971 = vsub.f32 %v827, %v906
        %v972 = vsub.f32 %v828, %v906
        %v973 = vsub.f32 %v829, %v906
        %v974 = vsub.f32 %v830, %v911
        %v975 = vsub.f32 %v831, %v911
        %v976 = vsub.f32 %v832, %v911
        %v977 = vsub.f32 %v833, %v911
        %v978 = vsub.f32 %v834, %v916
        %v979 = vsub.f32 %v835, %v916
        %v980 = vsub.f32 %v836, %v916
        %v981 = vsub.f32 %v837, %v916
        %v982 = vsub.f32 %v838, %v921
        %v983 = vsub.f32 %v839, %v921
        %v984 = vsub.f32 %v840, %v921
        %v985 = vsub.f32 %v841, %v921
        %v986 = vmul.f32 %v922, 1.442695
        %v987 = vpow.pop %v986
        %v988 = vmul.f32 %v923, 1.442695
        %v989 = vpow.pop %v988
        %v990 = vmul.f32 %v924, 1.442695
        %v991 = vpow.pop %v990
        %v992 = vmul.f32 %v925, 1.442695
        %v993 = vpow.pop %v992
        %v994 = vmul.f32 %v926, 1.442695
        %v995 = vpow.pop %v994
        %v996 = vmul.f32 %v927, 1.442695
        %v997 = vpow.pop %v996
        %v998 = vmul.f32 %v928, 1.442695
        %v999 = vpow.pop %v998
        %v1000 = vmul.f32 %v929, 1.442695
        %v1001 = vpow.pop %v1000
        %v1002 = vmul.f32 %v930, 1.442695
        %v1003 = vpow.pop %v1002
        %v1004 = vmul.f32 %v931, 1.442695
        %v1005 = vpow.pop %v1004
        %v1006 = vmul.f32 %v932, 1.442695
        %v1007 = vpow.pop %v1006
        %v1008 = vmul.f32 %v933, 1.442695
        %v1009 = vpow.pop %v1008
        %v1010 = vmul.f32 %v934, 1.442695
        %v1011 = vpow.pop %v1010
        %v1012 = vmul.f32 %v935, 1.442695
        %v1013 = vpow.pop %v1012
        %v1014 = vmul.f32 %v936, 1.442695
        %v1015 = vpow.pop %v1014
        %v1016 = vmul.f32 %v937, 1.442695
        %v1017 = vpow.pop %v1016
        %v1018 = vmul.f32 %v938, 1.442695
        %v1019 = vpow.pop %v1018
        %v1020 = vmul.f32 %v939, 1.442695
        %v1021 = vpow.pop %v1020
        %v1022 = vmul.f32 %v940, 1.442695
        %v1023 = vpow.pop %v1022
        %v1024 = vmul.f32 %v941, 1.442695
        %v1025 = vpow.pop %v1024
        %v1026 = vmul.f32 %v942, 1.442695
        %v1027 = vpow.pop %v1026
        %v1028 = vmul.f32 %v943, 1.442695
        %v1029 = vpow.pop %v1028
        %v1030 = vmul.f32 %v944, 1.442695
        %v1031 = vpow.pop %v1030
        %v1032 = vmul.f32 %v945, 1.442695
        %v1033 = vpow.pop %v1032
        %v1034 = vmul.f32 %v946, 1.442695
        %v1035 = vpow.pop %v1034
        %v1036 = vmul.f32 %v947, 1.442695
        %v1037 = vpow.pop %v1036
        %v1038 = vmul.f32 %v948, 1.442695
        %v1039 = vpow.pop %v1038
        %v1040 = vmul.f32 %v949, 1.442695
        %v1041 = vpow.pop %v1040
        %v1042 = vmul.f32 %v950, 1.442695
        %v1043 = vpow.pop %v1042
        %v1044 = vmul.f32 %v951, 1.442695
        %v1045 = vpow.pop %v1044
        %v1046 = vmul.f32 %v952, 1.442695
        %v1047 = vpow.pop %v1046
        %v1048 = vmul.f32 %v953, 1.442695
        %v1049 = vpow.pop %v1048
        %v1050 = vmul.f32 %v954, 1.442695
        %v1051 = vpow.pop %v1050
        %v1052 = vmul.f32 %v955, 1.442695
        %v1053 = vpow.pop %v1052
        %v1054 = vmul.f32 %v956, 1.442695
        %v1055 = vpow.pop %v1054
        %v1056 = vmul.f32 %v957, 1.442695
        %v1057 = vpow.pop %v1056
        %v1058 = vmul.f32 %v958, 1.442695
        %v1059 = vpow.pop %v1058
        %v1060 = vmul.f32 %v959, 1.442695
        %v1061 = vpow.pop %v1060
        %v1062 = vmul.f32 %v960, 1.442695
        %v1063 = vpow.pop %v1062
        %v1064 = vmul.f32 %v961, 1.442695
        %v1065 = vpow.pop %v1064
        %v1066 = vmul.f32 %v962, 1.442695
        %v1067 = vpow.pop %v1066
        %v1068 = vmul.f32 %v963, 1.442695
        %v1069 = vpow.pop %v1068
        %v1070 = vmul.f32 %v964, 1.442695
        %v1071 = vpow.pop %v1070
        %v1072 = vmul.f32 %v965, 1.442695
        %v1073 = vpow.pop %v1072
        %v1074 = vmul.f32 %v966, 1.442695
        %v1075 = vpow.pop %v1074
        %v1076 = vmul.f32 %v967, 1.442695
        %v1077 = vpow.pop %v1076
        %v1078 = vmul.f32 %v968, 1.442695
        %v1079 = vpow.pop %v1078
        %v1080 = vmul.f32 %v969, 1.442695
        %v1081 = vpow.pop %v1080
        %v1082 = vmul.f32 %v970, 1.442695
        %v1083 = vpow.pop %v1082
        %v1084 = vmul.f32 %v971, 1.442695
        %v1085 = vpow.pop %v1084
        %v1086 = vmul.f32 %v972, 1.442695
        %v1087 = vpow.pop %v1086
        %v1088 = vmul.f32 %v973, 1.442695
        %v1089 = vpow.pop %v1088
        %v1090 = vmul.f32 %v974, 1.442695
        %v1091 = vpow.pop %v1090
        %v1092 = vmul.f32 %v975, 1.442695
        %v1093 = vpow.pop %v1092
        %v1094 = vmul.f32 %v976, 1.442695
        %v1095 = vpow.pop %v1094
        %v1096 = vmul.f32 %v977, 1.442695
        %v1097 = vpow.pop %v1096
        %v1098 = vmul.f32 %v978, 1.442695
        %v1099 = vpow.pop %v1098
        %v1100 = vmul.f32 %v979, 1.442695
        %v1101 = vpow.pop %v1100
        %v1102 = vmul.f32 %v980, 1.442695
        %v1103 = vpow.pop %v1102
        %v1104 = vmul.f32 %v981, 1.442695
        %v1105 = vpow.pop %v1104
        %v1106 = vmul.f32 %v982, 1.442695
        %v1107 = vpow.pop %v1106
        %v1108 = vmul.f32 %v983, 1.442695
        %v1109 = vpow.pop %v1108
        %v1110 = vmul.f32 %v984, 1.442695
        %v1111 = vpow.pop %v1110
        %v1112 = vmul.f32 %v985, 1.442695
        %v1113 = vpow.pop %v1112
        %v1114 = vmul.f32 %v987, %v305
        %v1115 = vmul.f32 %v989, %v306
        %v1116 = vmul.f32 %v991, %v307
        %v1117 = vmul.f32 %v993, %v308
        %v1118 = vmul.f32 %v995, %v309
        %v1119 = vmul.f32 %v997, %v310
        %v1120 = vmul.f32 %v999, %v311
        %v1121 = vmul.f32 %v1001, %v312
        %v1122 = vmul.f32 %v1003, %v313
        %v1123 = vmul.f32 %v1005, %v314
        %v1124 = vmul.f32 %v1007, %v315
        %v1125 = vmul.f32 %v1009, %v316
        %v1126 = vmul.f32 %v1011, %v317
        %v1127 = vmul.f32 %v1013, %v318
        %v1128 = vmul.f32 %v1015, %v319
        %v1129 = vmul.f32 %v1017, %v320
        %v1130 = vmul.f32 %v1019, %v321
        %v1131 = vmul.f32 %v1021, %v322
        %v1132 = vmul.f32 %v1023, %v323
        %v1133 = vmul.f32 %v1025, %v324
        %v1134 = vmul.f32 %v1027, %v325
        %v1135 = vmul.f32 %v1029, %v326
        %v1136 = vmul.f32 %v1031, %v327
        %v1137 = vmul.f32 %v1033, %v328
        %v1138 = vmul.f32 %v1035, %v329
        %v1139 = vmul.f32 %v1037, %v330
        %v1140 = vmul.f32 %v1039, %v331
        %v1141 = vmul.f32 %v1041, %v332
        %v1142 = vmul.f32 %v1043, %v333
        %v1143 = vmul.f32 %v1045, %v334
        %v1144 = vmul.f32 %v1047, %v335
        %v1145 = vmul.f32 %v1049, %v336
        %v1146 = vmul.f32 %v1051, %v337
        %v1147 = vmul.f32 %v1053, %v338
        %v1148 = vmul.f32 %v1055, %v339
        %v1149 = vmul.f32 %v1057, %v340
        %v1150 = vmul.f32 %v1059, %v341
        %v1151 = vmul.f32 %v1061, %v342
        %v1152 = vmul.f32 %v1063, %v343
        %v1153 = vmul.f32 %v1065, %v344
        %v1154 = vmul.f32 %v1067, %v345
        %v1155 = vmul.f32 %v1069, %v346
        %v1156 = vmul.f32 %v1071, %v347
        %v1157 = vmul.f32 %v1073, %v348
        %v1158 = vmul.f32 %v1075, %v349
        %v1159 = vmul.f32 %v1077, %v350
        %v1160 = vmul.f32 %v1079, %v351
        %v1161 = vmul.f32 %v1081, %v352
        %v1162 = vmul.f32 %v1083, %v353
        %v1163 = vmul.f32 %v1085, %v354
        %v1164 = vmul.f32 %v1087, %v355
        %v1165 = vmul.f32 %v1089, %v356
        %v1166 = vmul.f32 %v1091, %v357
        %v1167 = vmul.f32 %v1093, %v358
        %v1168 = vmul.f32 %v1095, %v359
        %v1169 = vmul.f32 %v1097, %v360
        %v1170 = vmul.f32 %v1099, %v361
        %v1171 = vmul.f32 %v1101, %v362
        %v1172 = vmul.f32 %v1103, %v363
        %v1173 = vmul.f32 %v1105, %v364
        %v1174 = vmul.f32 %v1107, %v365
        %v1175 = vmul.f32 %v1109, %v366
        %v1176 = vmul.f32 %v1111, %v367
        %v1177 = vmul.f32 %v1113, %v368
        %v1178 = vadd.f32 %v1114, %v1115
        %v1179 = vadd.f32 %v1178, %v1116
        %v1180 = vadd.f32 %v1179, %v1117
        %1181 = vadd.xlane.f32.xlu0 %v1180
        %v1182 = vpop.xlane.xlu0 %1181
        %v1183 = vadd.f32 %v1118, %v1119
        %v1184 = vadd.f32 %v1183, %v1120
        %v1185 = vadd.f32 %v1184, %v1121
        %1186 = vadd.xlane.f32.xlu0 %v1185
        %v1187 = vpop.xlane.xlu0 %1186
        %v1188 = vadd.f32 %v1122, %v1123
        %v1189 = vadd.f32 %v1188, %v1124
        %v1190 = vadd.f32 %v1189, %v1125
        %1191 = vadd.xlane.f32.xlu0 %v1190
        %v1192 = vpop.xlane.xlu0 %1191
        %v1193 = vadd.f32 %v1126, %v1127
        %v1194 = vadd.f32 %v1193, %v1128
        %v1195 = vadd.f32 %v1194, %v1129
        %1196 = vadd.xlane.f32.xlu0 %v1195
        %v1197 = vpop.xlane.xlu0 %1196
        %v1198 = vadd.f32 %v1130, %v1131
        %v1199 = vadd.f32 %v1198, %v1132
        %v1200 = vadd.f32 %v1199, %v1133
        %1201 = vadd.xlane.f32.xlu0 %v1200
        %v1202 = vpop.xlane.xlu0 %1201
        %v1203 = vadd.f32 %v1134, %v1135
        %v1204 = vadd.f32 %v1203, %v1136
        %v1205 = vadd.f32 %v1204, %v1137
        %1206 = vadd.xlane.f32.xlu0 %v1205
        %v1207 = vpop.xlane.xlu0 %1206
        %v1208 = vadd.f32 %v1138, %v1139
        %v1209 = vadd.f32 %v1208, %v1140
        %v1210 = vadd.f32 %v1209, %v1141
        %1211 = vadd.xlane.f32.xlu0 %v1210
        %v1212 = vpop.xlane.xlu0 %1211
        %v1213 = vadd.f32 %v1142, %v1143
        %v1214 = vadd.f32 %v1213, %v1144
        %v1215 = vadd.f32 %v1214, %v1145
        %1216 = vadd.xlane.f32.xlu0 %v1215
        %v1217 = vpop.xlane.xlu0 %1216
        %v1218 = vadd.f32 %v1146, %v1147
        %v1219 = vadd.f32 %v1218, %v1148
        %v1220 = vadd.f32 %v1219, %v1149
        %1221 = vadd.xlane.f32.xlu0 %v1220
        %v1222 = vpop.xlane.xlu0 %1221
        %v1223 = vadd.f32 %v1150, %v1151
        %v1224 = vadd.f32 %v1223, %v1152
        %v1225 = vadd.f32 %v1224, %v1153
        %1226 = vadd.xlane.f32.xlu0 %v1225
        %v1227 = vpop.xlane.xlu0 %1226
        %v1228 = vadd.f32 %v1154, %v1155
        %v1229 = vadd.f32 %v1228, %v1156
        %v1230 = vadd.f32 %v1229, %v1157
        %1231 = vadd.xlane.f32.xlu0 %v1230
        %v1232 = vpop.xlane.xlu0 %1231
        %v1233 = vadd.f32 %v1158, %v1159
        %v1234 = vadd.f32 %v1233, %v1160
        %v1235 = vadd.f32 %v1234, %v1161
        %1236 = vadd.xlane.f32.xlu0 %v1235
        %v1237 = vpop.xlane.xlu0 %1236
        %v1238 = vadd.f32 %v1162, %v1163
        %v1239 = vadd.f32 %v1238, %v1164
        %v1240 = vadd.f32 %v1239, %v1165
        %1241 = vadd.xlane.f32.xlu0 %v1240
        %v1242 = vpop.xlane.xlu0 %1241
        %v1243 = vadd.f32 %v1166, %v1167
        %v1244 = vadd.f32 %v1243, %v1168
        %v1245 = vadd.f32 %v1244, %v1169
        %1246 = vadd.xlane.f32.xlu0 %v1245
        %v1247 = vpop.xlane.xlu0 %1246
        %v1248 = vadd.f32 %v1170, %v1171
        %v1249 = vadd.f32 %v1248, %v1172
        %v1250 = vadd.f32 %v1249, %v1173
        %1251 = vadd.xlane.f32.xlu0 %v1250
        %v1252 = vpop.xlane.xlu0 %1251
        %v1253 = vadd.f32 %v1174, %v1175
        %v1254 = vadd.f32 %v1253, %v1176
        %v1255 = vadd.f32 %v1254, %v1177
        %1256 = vadd.xlane.f32.xlu0 %v1255
        %v1257 = vpop.xlane.xlu0 %1256
        %1258 = vmatpush.msra.mxu0 %v256
        %1259 = vmatpush.msra.mxu0 %v255
        %1260 = vmatpush.msra.mxu0 %v254
        %1261 = vmatpush.msra.mxu0 %v253
        %1262 = vmatpush.msra.mxu0 %v252
        %1263 = vmatpush.msra.mxu0 %v251
        %1264 = vmatpush.msra.mxu0 %v250
        %1265 = vmatpush.msra.mxu0 %v249
        %1266 = vmatpush.msra.mxu0 %v248
        %1267 = vmatpush.msra.mxu0 %v247
        %1268 = vmatpush.msra.mxu0 %v246
        %1269 = vmatpush.msra.mxu0 %v245
        %1270 = vmatpush.msra.mxu0 %v244
        %1271 = vmatpush.msra.mxu0 %v243
        %1272 = vmatpush.msra.mxu0 %v242
        %1273 = vmatpush.msra.mxu0 %v241
        %1274 = vmatmul.f32.gmra.mxu0 %v1114
        %v1275 = vpop.f32.mrf.mxu0
        %v1276 = vadd.f32 0.0, %v1275
        %1277 = vmatmul.f32.gmra.mxu0 %v1118
        %v1278 = vpop.f32.mrf.mxu0
        %v1279 = vadd.f32 0.0, %v1278
        %1280 = vmatmul.f32.gmra.mxu0 %v1122
        %v1281 = vpop.f32.mrf.mxu0
        %v1282 = vadd.f32 0.0, %v1281
        %1283 = vmatmul.f32.gmra.mxu0 %v1126
        %v1284 = vpop.f32.mrf.mxu0
        %v1285 = vadd.f32 0.0, %v1284
        %1286 = vmatmul.f32.gmra.mxu0 %v1130
        %v1287 = vpop.f32.mrf.mxu0
        %v1288 = vadd.f32 0.0, %v1287
        %1289 = vmatmul.f32.gmra.mxu0 %v1134
        %v1290 = vpop.f32.mrf.mxu0
        %v1291 = vadd.f32 0.0, %v1290
        %1292 = vmatmul.f32.gmra.mxu0 %v1138
        %v1293 = vpop.f32.mrf.mxu0
        %v1294 = vadd.f32 0.0, %v1293
        %1295 = vmatmul.f32.gmra.mxu0 %v1142
        %v1296 = vpop.f32.mrf.mxu0
        %v1297 = vadd.f32 0.0, %v1296
        %1298 = vmatmul.f32.gmra.mxu0 %v1146
        %v1299 = vpop.f32.mrf.mxu0
        %v1300 = vadd.f32 0.0, %v1299
        %1301 = vmatmul.f32.gmra.mxu0 %v1150
        %v1302 = vpop.f32.mrf.mxu0
        %v1303 = vadd.f32 0.0, %v1302
        %1304 = vmatmul.f32.gmra.mxu0 %v1154
        %v1305 = vpop.f32.mrf.mxu0
        %v1306 = vadd.f32 0.0, %v1305
        %1307 = vmatmul.f32.gmra.mxu0 %v1158
        %v1308 = vpop.f32.mrf.mxu0
        %v1309 = vadd.f32 0.0, %v1308
        %1310 = vmatmul.f32.gmra.mxu0 %v1162
        %v1311 = vpop.f32.mrf.mxu0
        %v1312 = vadd.f32 0.0, %v1311
        %1313 = vmatmul.f32.gmra.mxu0 %v1166
        %v1314 = vpop.f32.mrf.mxu0
        %v1315 = vadd.f32 0.0, %v1314
        %1316 = vmatmul.f32.gmra.mxu0 %v1170
        %v1317 = vpop.f32.mrf.mxu0
        %v1318 = vadd.f32 0.0, %v1317
        %1319 = vmatmul.f32.gmra.mxu0 %v1174
        %v1320 = vpop.f32.mrf.mxu0
        %v1321 = vadd.f32 0.0, %v1320
        %1322 = vdwg.mxu0
        %1323 = vmatpush.msra.mxu0 %v272
        %1324 = vmatpush.msra.mxu0 %v271
        %1325 = vmatpush.msra.mxu0 %v270
        %1326 = vmatpush.msra.mxu0 %v269
        %1327 = vmatpush.msra.mxu0 %v268
        %1328 = vmatpush.msra.mxu0 %v267
        %1329 = vmatpush.msra.mxu0 %v266
        %1330 = vmatpush.msra.mxu0 %v265
        %1331 = vmatpush.msra.mxu0 %v264
        %1332 = vmatpush.msra.mxu0 %v263
        %1333 = vmatpush.msra.mxu0 %v262
        %1334 = vmatpush.msra.mxu0 %v261
        %1335 = vmatpush.msra.mxu0 %v260
        %1336 = vmatpush.msra.mxu0 %v259
        %1337 = vmatpush.msra.mxu0 %v258
        %1338 = vmatpush.msra.mxu0 %v257
        %1339 = vmatmul.f32.gmra.mxu0 %v1115
        %v1340 = vpop.f32.mrf.mxu0
        %v1341 = vadd.f32 %v1276, %v1340
        %1342 = vmatmul.f32.gmra.mxu0 %v1119
        %v1343 = vpop.f32.mrf.mxu0
        %v1344 = vadd.f32 %v1279, %v1343
        %1345 = vmatmul.f32.gmra.mxu0 %v1123
        %v1346 = vpop.f32.mrf.mxu0
        %v1347 = vadd.f32 %v1282, %v1346
        %1348 = vmatmul.f32.gmra.mxu0 %v1127
        %v1349 = vpop.f32.mrf.mxu0
        %v1350 = vadd.f32 %v1285, %v1349
        %1351 = vmatmul.f32.gmra.mxu0 %v1131
        %v1352 = vpop.f32.mrf.mxu0
        %v1353 = vadd.f32 %v1288, %v1352
        %1354 = vmatmul.f32.gmra.mxu0 %v1135
        %v1355 = vpop.f32.mrf.mxu0
        %v1356 = vadd.f32 %v1291, %v1355
        %1357 = vmatmul.f32.gmra.mxu0 %v1139
        %v1358 = vpop.f32.mrf.mxu0
        %v1359 = vadd.f32 %v1294, %v1358
        %1360 = vmatmul.f32.gmra.mxu0 %v1143
        %v1361 = vpop.f32.mrf.mxu0
        %v1362 = vadd.f32 %v1297, %v1361
        %1363 = vmatmul.f32.gmra.mxu0 %v1147
        %v1364 = vpop.f32.mrf.mxu0
        %v1365 = vadd.f32 %v1300, %v1364
        %1366 = vmatmul.f32.gmra.mxu0 %v1151
        %v1367 = vpop.f32.mrf.mxu0
        %v1368 = vadd.f32 %v1303, %v1367
        %1369 = vmatmul.f32.gmra.mxu0 %v1155
        %v1370 = vpop.f32.mrf.mxu0
        %v1371 = vadd.f32 %v1306, %v1370
        %1372 = vmatmul.f32.gmra.mxu0 %v1159
        %v1373 = vpop.f32.mrf.mxu0
        %v1374 = vadd.f32 %v1309, %v1373
        %1375 = vmatmul.f32.gmra.mxu0 %v1163
        %v1376 = vpop.f32.mrf.mxu0
        %v1377 = vadd.f32 %v1312, %v1376
        %1378 = vmatmul.f32.gmra.mxu0 %v1167
        %v1379 = vpop.f32.mrf.mxu0
        %v1380 = vadd.f32 %v1315, %v1379
        %1381 = vmatmul.f32.gmra.mxu0 %v1171
        %v1382 = vpop.f32.mrf.mxu0
        %v1383 = vadd.f32 %v1318, %v1382
        %1384 = vmatmul.f32.gmra.mxu0 %v1175
        %v1385 = vpop.f32.mrf.mxu0
        %v1386 = vadd.f32 %v1321, %v1385
        %1387 = vdwg.mxu0
        %1388 = vmatpush.msra.mxu0 %v288
        %1389 = vmatpush.msra.mxu0 %v287
        %1390 = vmatpush.msra.mxu0 %v286
        %1391 = vmatpush.msra.mxu0 %v285
        %1392 = vmatpush.msra.mxu0 %v284
        %1393 = vmatpush.msra.mxu0 %v283
        %1394 = vmatpush.msra.mxu0 %v282
        %1395 = vmatpush.msra.mxu0 %v281
        %1396 = vmatpush.msra.mxu0 %v280
        %1397 = vmatpush.msra.mxu0 %v279
        %1398 = vmatpush.msra.mxu0 %v278
        %1399 = vmatpush.msra.mxu0 %v277
        %1400 = vmatpush.msra.mxu0 %v276
        %1401 = vmatpush.msra.mxu0 %v275
        %1402 = vmatpush.msra.mxu0 %v274
        %1403 = vmatpush.msra.mxu0 %v273
        %1404 = vmatmul.f32.gmra.mxu0 %v1116
        %v1405 = vpop.f32.mrf.mxu0
        %v1406 = vadd.f32 %v1341, %v1405
        %1407 = vmatmul.f32.gmra.mxu0 %v1120
        %v1408 = vpop.f32.mrf.mxu0
        %v1409 = vadd.f32 %v1344, %v1408
        %1410 = vmatmul.f32.gmra.mxu0 %v1124
        %v1411 = vpop.f32.mrf.mxu0
        %v1412 = vadd.f32 %v1347, %v1411
        %1413 = vmatmul.f32.gmra.mxu0 %v1128
        %v1414 = vpop.f32.mrf.mxu0
        %v1415 = vadd.f32 %v1350, %v1414
        %1416 = vmatmul.f32.gmra.mxu0 %v1132
        %v1417 = vpop.f32.mrf.mxu0
        %v1418 = vadd.f32 %v1353, %v1417
        %1419 = vmatmul.f32.gmra.mxu0 %v1136
        %v1420 = vpop.f32.mrf.mxu0
        %v1421 = vadd.f32 %v1356, %v1420
        %1422 = vmatmul.f32.gmra.mxu0 %v1140
        %v1423 = vpop.f32.mrf.mxu0
        %v1424 = vadd.f32 %v1359, %v1423
        %1425 = vmatmul.f32.gmra.mxu0 %v1144
        %v1426 = vpop.f32.mrf.mxu0
        %v1427 = vadd.f32 %v1362, %v1426
        %1428 = vmatmul.f32.gmra.mxu0 %v1148
        %v1429 = vpop.f32.mrf.mxu0
        %v1430 = vadd.f32 %v1365, %v1429
        %1431 = vmatmul.f32.gmra.mxu0 %v1152
        %v1432 = vpop.f32.mrf.mxu0
        %v1433 = vadd.f32 %v1368, %v1432
        %1434 = vmatmul.f32.gmra.mxu0 %v1156
        %v1435 = vpop.f32.mrf.mxu0
        %v1436 = vadd.f32 %v1371, %v1435
        %1437 = vmatmul.f32.gmra.mxu0 %v1160
        %v1438 = vpop.f32.mrf.mxu0
        %v1439 = vadd.f32 %v1374, %v1438
        %1440 = vmatmul.f32.gmra.mxu0 %v1164
        %v1441 = vpop.f32.mrf.mxu0
        %v1442 = vadd.f32 %v1377, %v1441
        %1443 = vmatmul.f32.gmra.mxu0 %v1168
        %v1444 = vpop.f32.mrf.mxu0
        %v1445 = vadd.f32 %v1380, %v1444
        %1446 = vmatmul.f32.gmra.mxu0 %v1172
        %v1447 = vpop.f32.mrf.mxu0
        %v1448 = vadd.f32 %v1383, %v1447
        %1449 = vmatmul.f32.gmra.mxu0 %v1176
        %v1450 = vpop.f32.mrf.mxu0
        %v1451 = vadd.f32 %v1386, %v1450
        %1452 = vdwg.mxu0
        %1453 = vmatpush.msra.mxu0 %v304
        %1454 = vmatpush.msra.mxu0 %v303
        %1455 = vmatpush.msra.mxu0 %v302
        %1456 = vmatpush.msra.mxu0 %v301
        %1457 = vmatpush.msra.mxu0 %v300
        %1458 = vmatpush.msra.mxu0 %v299
        %1459 = vmatpush.msra.mxu0 %v298
        %1460 = vmatpush.msra.mxu0 %v297
        %1461 = vmatpush.msra.mxu0 %v296
        %1462 = vmatpush.msra.mxu0 %v295
        %1463 = vmatpush.msra.mxu0 %v294
        %1464 = vmatpush.msra.mxu0 %v293
        %1465 = vmatpush.msra.mxu0 %v292
        %1466 = vmatpush.msra.mxu0 %v291
        %1467 = vmatpush.msra.mxu0 %v290
        %1468 = vmatpush.msra.mxu0 %v289
        %1469 = vmatmul.f32.gmra.mxu0 %v1117
        %v1470 = vpop.f32.mrf.mxu0
        %v1471 = vadd.f32 %v1406, %v1470
        %1472 = vmatmul.f32.gmra.mxu0 %v1121
        %v1473 = vpop.f32.mrf.mxu0
        %v1474 = vadd.f32 %v1409, %v1473
        %1475 = vmatmul.f32.gmra.mxu0 %v1125
        %v1476 = vpop.f32.mrf.mxu0
        %v1477 = vadd.f32 %v1412, %v1476
        %1478 = vmatmul.f32.gmra.mxu0 %v1129
        %v1479 = vpop.f32.mrf.mxu0
        %v1480 = vadd.f32 %v1415, %v1479
        %1481 = vmatmul.f32.gmra.mxu0 %v1133
        %v1482 = vpop.f32.mrf.mxu0
        %v1483 = vadd.f32 %v1418, %v1482
        %1484 = vmatmul.f32.gmra.mxu0 %v1137
        %v1485 = vpop.f32.mrf.mxu0
        %v1486 = vadd.f32 %v1421, %v1485
        %1487 = vmatmul.f32.gmra.mxu0 %v1141
        %v1488 = vpop.f32.mrf.mxu0
        %v1489 = vadd.f32 %v1424, %v1488
        %1490 = vmatmul.f32.gmra.mxu0 %v1145
        %v1491 = vpop.f32.mrf.mxu0
        %v1492 = vadd.f32 %v1427, %v1491
        %1493 = vmatmul.f32.gmra.mxu0 %v1149
        %v1494 = vpop.f32.mrf.mxu0
        %v1495 = vadd.f32 %v1430, %v1494
        %1496 = vmatmul.f32.gmra.mxu0 %v1153
        %v1497 = vpop.f32.mrf.mxu0
        %v1498 = vadd.f32 %v1433, %v1497
        %1499 = vmatmul.f32.gmra.mxu0 %v1157
        %v1500 = vpop.f32.mrf.mxu0
        %v1501 = vadd.f32 %v1436, %v1500
        %1502 = vmatmul.f32.gmra.mxu0 %v1161
        %v1503 = vpop.f32.mrf.mxu0
        %v1504 = vadd.f32 %v1439, %v1503
        %1505 = vmatmul.f32.gmra.mxu0 %v1165
        %v1506 = vpop.f32.mrf.mxu0
        %v1507 = vadd.f32 %v1442, %v1506
        %1508 = vmatmul.f32.gmra.mxu0 %v1169
        %v1509 = vpop.f32.mrf.mxu0
        %v1510 = vadd.f32 %v1445, %v1509
        %1511 = vmatmul.f32.gmra.mxu0 %v1173
        %v1512 = vpop.f32.mrf.mxu0
        %v1513 = vadd.f32 %v1448, %v1512
        %1514 = vmatmul.f32.gmra.mxu0 %v1177
        %v1515 = vpop.f32.mrf.mxu0
        %v1516 = vadd.f32 %v1451, %v1515
        %1517 = vdwg.mxu0
        %v1518 = vrcp.pop %v1182
        %v1519 = vrcp.pop %v1187
        %v1520 = vrcp.pop %v1192
        %v1521 = vrcp.pop %v1197
        %v1522 = vrcp.pop %v1202
        %v1523 = vrcp.pop %v1207
        %v1524 = vrcp.pop %v1212
        %v1525 = vrcp.pop %v1217
        %v1526 = vrcp.pop %v1222
        %v1527 = vrcp.pop %v1227
        %v1528 = vrcp.pop %v1232
        %v1529 = vrcp.pop %v1237
        %v1530 = vrcp.pop %v1242
        %v1531 = vrcp.pop %v1247
        %v1532 = vrcp.pop %v1252
        %v1533 = vrcp.pop %v1257
        %v1534 = vmul.f32 %v1471, %v1518
        %v1535 = vmul.f32 %v1474, %v1519
        %v1536 = vmul.f32 %v1477, %v1520
        %v1537 = vmul.f32 %v1480, %v1521
        %v1538 = vmul.f32 %v1483, %v1522
        %v1539 = vmul.f32 %v1486, %v1523
        %v1540 = vmul.f32 %v1489, %v1524
        %v1541 = vmul.f32 %v1492, %v1525
        %v1542 = vmul.f32 %v1495, %v1526
        %v1543 = vmul.f32 %v1498, %v1527
        %v1544 = vmul.f32 %v1501, %v1528
        %v1545 = vmul.f32 %v1504, %v1529
        %v1546 = vmul.f32 %v1507, %v1530
        %v1547 = vmul.f32 %v1510, %v1531
        %v1548 = vmul.f32 %v1513, %v1532
        %v1549 = vmul.f32 %v1516, %v1533
        %1550 = vst [vmem:[%s209] sm:$0xff] %v1534
        %1551 = vst [vmem:[%s209 + $0x8] sm:$0xff] %v1535
        %1552 = vst [vmem:[%s209 + $0x10] sm:$0xff] %v1536
        %1553 = vst [vmem:[%s209 + $0x18] sm:$0xff] %v1537
        %1554 = vst [vmem:[%s209 + $0x20] sm:$0xff] %v1538
        %1555 = vst [vmem:[%s209 + $0x28] sm:$0xff] %v1539
        %1556 = vst [vmem:[%s209 + $0x30] sm:$0xff] %v1540
        %1557 = vst [vmem:[%s209 + $0x38] sm:$0xff] %v1541
        %1558 = vst [vmem:[%s209 + $0x40] sm:$0xff] %v1542
        %1559 = vst [vmem:[%s209 + $0x48] sm:$0xff] %v1543
        %1560 = vst [vmem:[%s209 + $0x50] sm:$0xff] %v1544
        %1561 = vst [vmem:[%s209 + $0x58] sm:$0xff] %v1545
        %1562 = vst [vmem:[%s209 + $0x60] sm:$0xff] %v1546
        %1563 = vst [vmem:[%s209 + $0x68] sm:$0xff] %v1547
        %1564 = vst [vmem:[%s209 + $0x70] sm:$0xff] %v1548
        %1565 = vst [vmem:[%s209 + $0x78] sm:$0xff] %v1549
        %s1566 = sand.u32 %s120, 1
        %s1567 = scalar_lea.sflag [#allocation3], %s1566
        %s1568 = sand.u32 %s120, 1
        %s1569 = smul.addr %s1568, 128
        %s1570 = scalar_lea.vmem [#allocation2], %s1569
        // Predicated region
        $region37: #{sgat_forward.3} parent=35 // pred_check
          %p1571 = pneg %p130
        $region38: #{sgat_forward.3} parent=35 // pred_check_branch
          %1573 = sbr.rel (%p1571) target = $region40
        $region39: #{sgat_forward.3} parent=35 // pred_region
          %s1574 = smul.u32 16, %s18
          %1576 = vsyncadd %s1567, 0
          %s1577 = smul.addr %s1574, 8
          %s1578 = scalar_lea.hbm %s4, %s1577
          %s1579 = sshll.u32 %s1570, 4
          %s1580 = int_to_ptr.vmem [resolvable:$true] %s1579
          %s1581 = sshll.u32 %s1578, 4
          %s1582 = int_to_ptr.hbm [resolvable:$true] %s1581
          %1587 = dma.vmem_to_hbm [thread:$0]  %s1580, 2048, %s1582, %s1567, 128, 128, 8
        $region40: #{sgat_forward.3} parent=35 // pred_fallthru
          _
      $region36: #{sgat_forward.3} parent=5 // pred_fallthru
        _
      %p1588 = scmp.le.s32.totalorder 2, %s13
      // Predicated region
      $region41: #{sgat_forward.3} parent=5 // pred_check
        %p1589 = pneg %p1588
      $region42: #{sgat_forward.3} parent=5 // pred_check_branch
        %1591 = sbr.rel (%p1589) target = $region44
      $region43: #{sgat_forward.3} parent=5 // pred_region
        %s1592 = ssub.s32 %s13, 2
        // Predicated region
        $region45: #{sgat_forward.3} parent=43 // pred_check
          %p1593 = pneg %p136
        $region46: #{sgat_forward.3} parent=43 // pred_check_branch
          %1595 = sbr.rel (%p1593) target = $region48
        $region47: #{sgat_forward.3} parent=43 // pred_region
          %s1596 = sand.u32 %s121, 1
          %s1597 = scalar_lea.sflag [#allocation3], %s1596
          %s1598 = sand.u32 %s121, 1
          %s1599 = smul.addr %s1598, 128
          %s1600 = scalar_lea.vmem [#allocation2], %s1599
          %1602 = dma.done %s1597, 2048
        $region48: #{sgat_forward.3} parent=43 // pred_fallthru
          _
      $region44: #{sgat_forward.3} parent=5 // pred_fallthru
        _
    $region6: #{sgat_forward.3} parent=1 // loop_footer
      %s17 = sadd.s32 1, %s13
    $region7: #{sgat_forward.3} parent=1 // loop_footer_branch
      %12 = sbr.rel target = $region3
    $region8: #{sgat_forward.3} parent=1 // loop_exit
      _
    %1603 = vsyncpa [#allocation3], 1
    %s1604 = scalar_lea.sflag [#allocation3], 1
    %1605 = vsyncpa %s1604, 1

</llo_original>
